<compile_context>
chip_gen: v7x
topology: tpu7x:2x2x1
jax: 0.10.0
libtpu: 0.0.40
codegen_flags: <defaults>
</compile_context>

<pallas_src>
from functools import partial

import jax
import jax.numpy as jnp
from jax.experimental import pallas as pl
from jax.experimental.pallas import tpu as pltpu


def prepare_cvae_prior_params(w1, b1, wmu, bmu, wlv, blv):
    """One-time (weight-load-time) preparation.  Do NOT call per forward.

    w1:  [cond_dim, hidden]   b1:  [hidden]      (transpose of nn.Linear)
    wmu: [hidden, latent]     bmu: [latent]
    wlv: [hidden, latent]     blv: [latent]
    """
    return {
        # The only big operand: cast once to bf16 so the per-call kernel
        # streams half the HBM bytes.  No padding (ragged tail masked in-kernel).
        "w1": jnp.asarray(w1).astype(jnp.bfloat16),
        "b1": jnp.asarray(b1, jnp.float32).reshape(1, -1),
        "wmu": jnp.asarray(wmu, jnp.float32),
        "bmu": jnp.asarray(bmu, jnp.float32).reshape(1, -1),
        "wlv": jnp.asarray(wlv, jnp.float32),
        "blv": jnp.asarray(blv, jnp.float32).reshape(1, -1),
    }


def _vmem_info():
    """(vmem_limit_bytes, vmem_capacity_bytes) - generation-aware, headroomed."""
    try:
        cap = int(pltpu.get_tpu_info().vmem_capacity_bytes)
    except Exception:
        cap = 64 << 20  # conservative fallback = v7x per-TensorCore VMEM
    # Never request the full physical VMEM (leave compiler scratch headroom):
    # ~54 MiB on v7x (64 MiB physical), ~110 MiB on v5e/v6e (128 MiB physical).
    limit = max(32 << 20, min(int(cap * 0.85), 110 << 20))
    return limit, cap


@partial(jax.jit, static_argnames=("tk", "hidden_split"))
def cvae_prior_forward(c, params, *, tk=None, hidden_split=None):
    """Fused fc1 (Pallas) + tiny mu/logvar epilogue (XLA).  Returns (mu, logvar).

    c: [B, cond_dim] float32.  params: from prepare_cvae_prior_params().
    """
    w1, b1 = params["w1"], params["b1"]
    B, cond_dim = c.shape
    cond_in, hidden_dim = w1.shape
    assert cond_in == cond_dim
    latent_dim = params["wmu"].shape[1]

    vmem_limit, vmem_cap = _vmem_info()

    # ---- hidden (N) split: dual-TensorCore streaming on v7x ----------------
    if hidden_split is None:
        # 64 MiB VMEM/core <=> v7x-class (2 TCs/chip) -> split; 128 MiB parts
        # (v5e/v6e, 1 TC) gain nothing and just pay extra grid steps.
        hidden_split = 2 if vmem_cap <= (64 << 20) else 1
    if hidden_split > 1 and hidden_dim % (128 * hidden_split) == 0:
        n_h = hidden_split
    else:
        n_h = 1
    th = hidden_dim // n_h

    # ---- K tile selection (generation-aware, footprint-driven) -------------
    cond_128 = pl.cdiv(cond_dim, 128) * 128
    w1_item = jnp.dtype(w1.dtype).itemsize
    c_item = jnp.dtype(c.dtype).itemsize
    per_tk = 2 * (th * w1_item + B * c_item)      # double-buffered W1 + c per K
    fixed = 3 * B * th * 4 + 2 * th * 4           # acc + out dbl-buf + b1
    fit_tk = max(128, ((int(vmem_limit * 0.6) - fixed) // per_tk) // 128 * 128)
    tk_cap = 12288 if vmem_cap <= (64 << 20) else 16384
    if tk is None:
        tk = tk_cap
    tk = max(128, (min(tk, fit_tk, cond_128) // 128) * 128)
    n_k = pl.cdiv(cond_dim, tk)

    # ---- kernel: h = relu(c @ W1 + b1), K-reduction over cond_dim ----------
    def kernel(c_ref, w1_ref, b1_ref, h_ref, acc_ref):
        k = pl.program_id(1)

        @pl.when(k == 0)
        def _():
            acc_ref[...] = jnp.zeros_like(acc_ref)

        # Stream c in its stored f32; cast per-tile to the weight's (bf16)
        # streaming dtype for a single-pass MXU matmul with f32 accumulation.
        c_tile = c_ref[...].astype(w1_ref.dtype)

        @pl.when(k < pl.num_programs(1) - 1)
        def _():
            acc_ref[...] += jnp.dot(c_tile, w1_ref[...],
                                    preferred_element_type=jnp.float32)

        @pl.when(k == pl.num_programs(1) - 1)
        def _():
            # Ragged K tail: the last block extends past cond_dim and its
            # out-of-bounds region is undefined.  Mask BOTH operands with
            # exact zeros (jnp.where yields 0 even if the garbage is NaN/Inf),
            # so no wrapper-side padding of c or W1 is ever needed.
            col = jax.lax.broadcasted_iota(jnp.int32, c_tile.shape, 1)
            c_m = jnp.where(k * tk + col < cond_dim, c_tile, 0)
            row = jax.lax.broadcasted_iota(jnp.int32, w1_ref.shape, 0)
            w1_m = jnp.where(k * tk + row < cond_dim, w1_ref[...], 0)
            acc = acc_ref[...] + jnp.dot(c_m, w1_m,
                                         preferred_element_type=jnp.float32)
            h_ref[...] = jnp.maximum(acc + b1_ref[...], 0.0).astype(h_ref.dtype)

    grid_spec = pltpu.PrefetchScalarGridSpec(
        num_scalar_prefetch=0,
        grid=(n_h, n_k),
        in_specs=[
            pl.BlockSpec((B, tk), lambda h, k: (0, k)),          # c  (f32)
            pl.BlockSpec((tk, th), lambda h, k: (k, h)),         # W1 (bf16)
            pl.BlockSpec((1, th), lambda h, k: (0, h)),          # b1
        ],
        out_specs=pl.BlockSpec((B, th), lambda h, k: (0, h)),    # h = relu(fc1)
        scratch_shapes=[pltpu.VMEM((B, th), jnp.float32)],
    )

    h = pl.pallas_call(
        kernel,
        out_shape=jax.ShapeDtypeStruct((B, hidden_dim), jnp.float32),
        grid_spec=grid_spec,
        compiler_params=pltpu.CompilerParams(
            # Output is written only on the last K step with a k-invariant
            # output index_map -> K axis must stay "arbitrary".  The hidden
            # axis is independent -> "parallel" (megacore split on v7x).
            dimension_semantics=("parallel", "arbitrary"),
            vmem_limit_bytes=vmem_limit,
        ),
    )(c, w1, b1)

    # ---- tiny epilogue in XLA (~16 KB of weights, f32 for parity) ----------
    mu = h @ params["wmu"] + params["bmu"]
    logvar = jnp.clip(h @ params["wlv"] + params["blv"], -10.0, 10.0)
    return mu, logvar


def xavier_uniform(key, fan_in, fan_out, shape, dtype=jnp.float32):
    bound = (6.0 / (fan_in + fan_out)) ** 0.5
    return jax.random.uniform(key, shape, dtype, minval=-bound, maxval=bound)


if __name__ == "__main__":
    # Small demo shapes consistent with the module (hidden=512, latent=64).
    # cond_dim deliberately NOT tile-divisible so the in-kernel ragged-tail
    # masking is exercised (the real cond_dim=392011 isn't divisible either).
    B = 8
    COND_DIM = 2100
    HIDDEN_DIM = 512
    LATENT_DIM = 64

    key = jax.random.PRNGKey(0)
    k_c, k_w1, k_wmu, k_wlv = jax.random.split(key, 4)

    c = jax.random.normal(k_c, (B, COND_DIM), jnp.float32)

    # Deterministic xavier_uniform init (zero biases), stored [in, out].
    w1 = xavier_uniform(k_w1, COND_DIM, HIDDEN_DIM, (COND_DIM, HIDDEN_DIM))
    b1 = jnp.zeros((HIDDEN_DIM,), jnp.float32)
    wmu = xavier_uniform(k_wmu, HIDDEN_DIM, LATENT_DIM, (HIDDEN_DIM, LATENT_DIM))
    bmu = jnp.zeros((LATENT_DIM,), jnp.float32)
    wlv = xavier_uniform(k_wlv, HIDDEN_DIM, LATENT_DIM, (HIDDEN_DIM, LATENT_DIM))
    blv = jnp.zeros((LATENT_DIM,), jnp.float32)

    # One-time weight preparation (the per-call path does no weight copies).
    params = prepare_cvae_prior_params(w1, b1, wmu, bmu, wlv, blv)

    # Small tk + forced hidden split so the demo exercises multi-step K
    # accumulation, the ragged-tail masking, and the dual-core hidden path.
    mu, logvar = cvae_prior_forward(c, params, tk=512, hidden_split=2)
    jax.block_until_ready((mu, logvar))

    # Pure-JAX reference using the same bf16-cast streamed operands (f32
    # accumulation), so only accumulation order differs from the kernel.
    c_bf = c.astype(jnp.bfloat16).astype(jnp.float32)
    w1_bf = w1.astype(jnp.bfloat16).astype(jnp.float32)
    h_ref = jax.nn.relu(c_bf @ w1_bf + b1[None, :])
    mu_ref = h_ref @ wmu + bmu[None, :]
    lv_ref = jnp.clip(h_ref @ wlv + blv[None, :], -10.0, 10.0)

    assert mu.shape == (B, LATENT_DIM) and logvar.shape == (B, LATENT_DIM)
    assert jnp.allclose(mu, mu_ref, atol=2e-3, rtol=2e-3)
    assert jnp.allclose(logvar, lv_ref, atol=2e-3, rtol=2e-3)

    print("KERNEL_OK")
</pallas_src>

<mosaic_0001>
module attributes {stable_mosaic.version = 11 : i64} {
  func.func @kernel(%arg0: i32, %arg1: i32, %arg2: memref<8x512xf32, #tpu.memory_space<vmem>>, %arg3: memref<512x256xbf16, #tpu.memory_space<vmem>>, %arg4: memref<1x256xf32, #tpu.memory_space<vmem>>, %arg5: memref<8x256xf32, #tpu.memory_space<vmem>>, %arg6: memref<8x256xf32, #tpu.memory_space<vmem>>) attributes {dimension_semantics = [#tpu.dimension_semantics<parallel>, #tpu.dimension_semantics<arbitrary>], iteration_bounds = array<i64: 2, 5>, scalar_prefetch = 0 : i64, scratch_operands = 1 : i64, tpu.core_type = #tpu.core_type<tc>, window_params = [{transform_indices = @transform_0, window_bounds = array<i64: 8, 512>}, {transform_indices = @transform_1, window_bounds = array<i64: 512, 256>}, {transform_indices = @transform_2, window_bounds = array<i64: 1, 256>}, {transform_indices = @transform_3, window_bounds = array<i64: 8, 256>}]} {
    %c0_i32 = arith.constant 0 : i32
    %0 = arith.cmpi eq, %arg1, %c0_i32 : i32
    %1 = arith.extui %0 : i1 to i32
    %c0_i32_0 = arith.constant 0 : i32
    %2 = arith.cmpi ne, %1, %c0_i32_0 : i32
    scf.if %2 {
      %cst = arith.constant 0.000000e+00 : f32
      %11 = vector.broadcast %cst : f32 to vector<8x256xf32>
      %c0_5 = arith.constant 0 : index
      %c0_6 = arith.constant 0 : index
      %12 = vector.load %arg6[%c0_5, %c0_6] : memref<8x256xf32, #tpu.memory_space<vmem>>, vector<8x256xf32>
      tpu.vector_store %arg6[%c0_5, %c0_6], %11 {strides = array<i32>} : memref<8x256xf32, #tpu.memory_space<vmem>>, vector<8x256xf32>,
    } else {
    }
    %c0 = arith.constant 0 : index
    %c0_1 = arith.constant 0 : index
    %3 = vector.load %arg2[%c0, %c0_1] : memref<8x512xf32, #tpu.memory_space<vmem>>, vector<8x512xf32>
    %4 = arith.truncf %3 : vector<8x512xf32> to vector<8x512xbf16>
    %c4_i32 = arith.constant 4 : i32
    %5 = arith.cmpi slt, %arg1, %c4_i32 : i32
    %6 = arith.extui %5 : i1 to i32
    %c0_i32_2 = arith.constant 0 : i32
    %7 = arith.cmpi ne, %6, %c0_i32_2 : i32
    scf.if %7 {
      %c0_5 = arith.constant 0 : index
      %c0_6 = arith.constant 0 : index
      %11 = vector.load %arg6[%c0_5, %c0_6] : memref<8x256xf32, #tpu.memory_space<vmem>>, vector<8x256xf32>
      %c0_7 = arith.constant 0 : index
      %c0_8 = arith.constant 0 : index
      %12 = vector.load %arg3[%c0_7, %c0_8] : memref<512x256xbf16, #tpu.memory_space<vmem>>, vector<512x256xbf16>
      %cst = arith.constant dense<0.000000e+00> : vector<8x256xf32>
      %13 = tpu.matmul %4, %12, %cst {dimension_numbers = #tpu.dot_dimension_numbers<[1], [0], [0], [1], [0, 0, 1, 1], [], []>} : vector<8x512xbf16>, vector<512x256xbf16>, vector<8x256xf32> -> vector<8x256xf32>
      %14 = arith.addf %11, %13 : vector<8x256xf32>
      %c0_9 = arith.constant 0 : index
      %c0_10 = arith.constant 0 : index
      %15 = vector.load %arg6[%c0_9, %c0_10] : memref<8x256xf32, #tpu.memory_space<vmem>>, vector<8x256xf32>
      tpu.vector_store %arg6[%c0_9, %c0_10], %14 {strides = array<i32>} : memref<8x256xf32, #tpu.memory_space<vmem>>, vector<8x256xf32>,
    } else {
    }
    %c4_i32_3 = arith.constant 4 : i32
    %8 = arith.cmpi eq, %arg1, %c4_i32_3 : i32
    %9 = arith.extui %8 : i1 to i32
    %c0_i32_4 = arith.constant 0 : i32
    %10 = arith.cmpi ne, %9, %c0_i32_4 : i32
    scf.if %10 {
      %11 = tpu.iota {dimensions = array<i32: 1>} : vector<8x512xi32>
      %c512_i32 = arith.constant 512 : i32
      %12 = arith.muli %arg1, %c512_i32 : i32
      %13 = vector.broadcast %12 : i32 to vector<8x512xi32>
      %14 = arith.addi %13, %11 : vector<8x512xi32>
      %c2100_i32 = arith.constant 2100 : i32
      %15 = vector.broadcast %c2100_i32 : i32 to vector<8x512xi32>
      %16 = arith.cmpi slt, %14, %15 : vector<8x512xi32>
      %c0_i32_5 = arith.constant 0 : i32
      %17 = arith.sitofp %c0_i32_5 : i32 to bf16
      %18 = vector.broadcast %17 : bf16 to vector<8x512xbf16>
      %19 = arith.select %16, %4, %18 : vector<8x512xi1>, vector<8x512xbf16>
      %20 = tpu.iota {dimensions = array<i32: 0>} : vector<512x256xi32>
      %c512_i32_6 = arith.constant 512 : i32
      %21 = arith.muli %arg1, %c512_i32_6 : i32
      %22 = vector.broadcast %21 : i32 to vector<512x256xi32>
      %23 = arith.addi %22, %20 : vector<512x256xi32>
      %c2100_i32_7 = arith.constant 2100 : i32
      %24 = vector.broadcast %c2100_i32_7 : i32 to vector<512x256xi32>
      %25 = arith.cmpi slt, %23, %24 : vector<512x256xi32>
      %c0_8 = arith.constant 0 : index
      %c0_9 = arith.constant 0 : index
      %26 = vector.load %arg3[%c0_8, %c0_9] : memref<512x256xbf16, #tpu.memory_space<vmem>>, vector<512x256xbf16>
      %c0_i32_10 = arith.constant 0 : i32
      %27 = arith.sitofp %c0_i32_10 : i32 to bf16
      %28 = vector.broadcast %27 : bf16 to vector<512x256xbf16>
      %29 = arith.select %25, %26, %28 : vector<512x256xi1>, vector<512x256xbf16>
      %c0_11 = arith.constant 0 : index
      %c0_12 = arith.constant 0 : index
      %30 = vector.load %arg6[%c0_11, %c0_12] : memref<8x256xf32, #tpu.memory_space<vmem>>, vector<8x256xf32>
      %cst = arith.constant dense<0.000000e+00> : vector<8x256xf32>
      %31 = tpu.matmul %19, %29, %cst {dimension_numbers = #tpu.dot_dimension_numbers<[1], [0], [0], [1], [0, 0, 1, 1], [], []>} : vector<8x512xbf16>, vector<512x256xbf16>, vector<8x256xf32> -> vector<8x256xf32>
      %32 = arith.addf %30, %31 : vector<8x256xf32>
      %c0_13 = arith.constant 0 : index
      %c0_14 = arith.constant 0 : index
      %33 = vector.load %arg4[%c0_13, %c0_14] : memref<1x256xf32, #tpu.memory_space<vmem>>, vector<1x256xf32>
      %34 = vector.broadcast %33 : vector<1x256xf32> to vector<8x256xf32>
      %35 = arith.addf %32, %34 : vector<8x256xf32>
      %cst_15 = arith.constant 0.000000e+00 : f32
      %36 = vector.broadcast %cst_15 : f32 to vector<8x256xf32>
      %37 = arith.maximumf %35, %36 : vector<8x256xf32>
      %c0_16 = arith.constant 0 : index
      %c0_17 = arith.constant 0 : index
      %38 = vector.load %arg5[%c0_16, %c0_17] : memref<8x256xf32, #tpu.memory_space<vmem>>, vector<8x256xf32>
      tpu.vector_store %arg5[%c0_16, %c0_17], %37 {strides = array<i32>} : memref<8x256xf32, #tpu.memory_space<vmem>>, vector<8x256xf32>,
    } else {
    }
    return
  }
  func.func @transform_0(%arg0: i32, %arg1: i32) -> (i32, i32) {
    %c0_i32 = arith.constant 0 : i32
    %c0_i32_0 = arith.constant 0 : i32
    return %c0_i32, %arg1 : i32, i32
  }
  func.func @transform_1(%arg0: i32, %arg1: i32) -> (i32, i32) {
    %c0_i32 = arith.constant 0 : i32
    return %arg1, %arg0 : i32, i32
  }
  func.func @transform_2(%arg0: i32, %arg1: i32) -> (i32, i32) {
    %c0_i32 = arith.constant 0 : i32
    %c0_i32_0 = arith.constant 0 : i32
    return %c0_i32, %arg0 : i32, i32
  }
  func.func @transform_3(%arg0: i32, %arg1: i32) -> (i32, i32) {
    %c0_i32 = arith.constant 0 : i32
    %c0_i32_0 = arith.constant 0 : i32
    return %c0_i32, %arg0 : i32, i32
  }
}

</mosaic_0001>

<llo_original>
// kernel: cvae_prior_forward.1
$region0: #{cvae_prior_forward.1}
  #allocation0 [shape = 'u32[]', space=smem, size = 0x4, offset = 0x4, fixed_abs, tag = 'smem constant byte address 0x4 - core index']
  #allocation1 [shape = 'u32[144,128]{1,0:T(1,128)}', space=vmem, size = 0x12000, scoped, tag = 'internal scratch']
  #allocation2 [shape = 'f32[8,256]{1,0:T(8,128)}', space=vmem, size = 0x2000, scoped, tag = 'scratch operand']
  %s0 = inlined_call_operand.hbm [shape: f32[8,2100], index: 0, kind: input, shape index: {}]
  %s1 = inlined_call_operand.hbm [shape: bf16[2100,512], index: 1, kind: input, shape index: {}]
  %s2 = inlined_call_operand.hbm [shape: f32[1,512], index: 2, kind: input, shape index: {}]
  %s3 = inlined_call_operand.vmem [shape: f32[8,512], index: 3, kind: output, shape index: {}]
  %s4 = sld [smem:[#allocation0]]
  $region69: #{cvae_prior_forward.1} parent=0
    _
  %s6 = ssub.s32 1, %s4
  %s7 = scalar_select 0, %s6, %s4
  $region1: #{cvae_prior_forward.1} parent=0
    #allocation3 [shape = 'u8[32768]{0}', space=vmem, size = 0x8000, scoped, tag = 'input window, operand 0']
    #allocation4 [shape = 's32[2]{0}', space=sflag, size = 0x8, scoped, tag = 'scoped memory for cvae_prior_forward.1']
    #allocation5 [shape = 'u8[524288]{0}', space=vmem, size = 0x80000, scoped, tag = 'input window, operand 1']
    #allocation6 [shape = 's32[2]{0}', space=sflag, size = 0x8, scoped, tag = 'scoped memory for cvae_prior_forward.1']
    #allocation7 [shape = 'u8[2048]{0}', space=vmem, size = 0x800, scoped, tag = 'input window, operand 2']
    %8 = vsyncpa [#allocation4], 0
    %s9 = scalar_lea.sflag [#allocation4], 1
    %10 = vsyncpa %s9, 0
    %11 = vsyncpa [#allocation6], 0
    %s12 = scalar_lea.sflag [#allocation6], 1
    %13 = vsyncpa %s12, 0
    loop: start=0, step=1, limit=12
    $region2: #{cvae_prior_forward.1} parent=1 // loop_pre_header
      _
    $region3: #{cvae_prior_forward.1} parent=1 // loop_header
      %s15 = sphi 0, %s19
      %p16 = scmp.ge.s32.totalorder %s15, 12
      %s22 = sphi 0, %s34
      %s23 = sphi 0, %s30
      %s24 = sphi 0, %s22
      %s25 = sphi 0, %s23
      %s26 = sphi 0, %s24
      %s27 = sphi 0, %s25
      %s37 = sphi 0, %s39
      %s40 = sphi 0, %s37
      %s41 = sphi 0, %s40
      %s57 = sphi 0, %s41
      %s65 = sphi 0, %s67
      %s68 = sphi 0, %s65
      %s69 = sphi 0, %s68
      %s85 = sphi 0, %s69
      %s91 = sphi 0, %s93
      %s94 = sphi 0, %s91
      %s95 = sphi 0, %s94
      %s111 = sphi 0, %s95
      %s117 = sphi 0, %s119
      %s120 = sphi 0, %s117
      %s121 = sphi 0, %s120
      %s137 = sphi 0, %s121
    $region4: #{cvae_prior_forward.1} parent=1 // loop_header_branch
      %18 = sbr.rel (%p16) target = $region8
    $region5: #{cvae_prior_forward.1} parent=1 // loop_body
      %s20 = ssub.s32 %s15, 1
      %s21 = ssub.s32 %s15, 2
      %s28 = sadd.s32 1, %s23
      %p29 = scmp.ge.s32.totalorder %s28, 5
      %s30 = scalar_select %p29, 0, %s28
      %s31 = sadd.s32 1, %s22
      %s32 = scalar_select %p29, %s31, %s22
      %p33 = scmp.ge.s32.totalorder %s32, 2
      %s34 = scalar_select %p33, 0, %s32
      %s35 = ssub.s32 %s23, %s30
      %p36 = scmp.eq.s32.totalorder %s35, 0
      %s38 = sadd.s32 %s37, 1
      %s39 = scalar_select %p36, %s37, %s38
      %p42 = pneg %p36
      %p43 = scmp.eq.s32.totalorder %s15, 9
      %p44 = por %p42, %p43
      %p45 = scmp.ne.s32.totalorder %s37, %s40
      %p46 = scmp.eq.s32.totalorder %s15, 0
      %p47 = por %p45, %p46
      %p48 = scmp.ne.s32.totalorder %s37, %s40
      %p49 = scmp.eq.s32.totalorder %s20, 9
      %p50 = por %p48, %p49
      %p51 = scmp.ne.s32.totalorder %s40, %s41
      %p52 = scmp.eq.s32.totalorder %s20, 0
      %p53 = por %p51, %p52
      %p54 = scmp.ne.s32.totalorder %s40, %s41
      %p55 = scmp.eq.s32.totalorder %s21, 9
      %p56 = por %p54, %p55
      %p58 = scmp.ne.s32.totalorder %s41, %s57
      %p59 = scmp.eq.s32.totalorder %s21, 0
      %p60 = por %p58, %p59
      %s61 = ssub.s32 %s23, %s30
      %s62 = ssub.s32 %s22, %s34
      %s63 = sor.u32 %s61, %s62
      %p64 = scmp.eq.s32.totalorder %s63, 0
      %s66 = sadd.s32 %s65, 1
      %s67 = scalar_select %p64, %s65, %s66
      %p70 = pneg %p64
      %p71 = scmp.eq.s32.totalorder %s15, 9
      %p72 = por %p70, %p71
      %p73 = scmp.ne.s32.totalorder %s65, %s68
      %p74 = scmp.eq.s32.totalorder %s15, 0
      %p75 = por %p73, %p74
      %p76 = scmp.ne.s32.totalorder %s65, %s68
      %p77 = scmp.eq.s32.totalorder %s20, 9
      %p78 = por %p76, %p77
      %p79 = scmp.ne.s32.totalorder %s68, %s69
      %p80 = scmp.eq.s32.totalorder %s20, 0
      %p81 = por %p79, %p80
      %p82 = scmp.ne.s32.totalorder %s68, %s69
      %p83 = scmp.eq.s32.totalorder %s21, 9
      %p84 = por %p82, %p83
      %p86 = scmp.ne.s32.totalorder %s69, %s85
      %p87 = scmp.eq.s32.totalorder %s21, 0
      %p88 = por %p86, %p87
      %s89 = ssub.s32 %s22, %s34
      %p90 = scmp.eq.s32.totalorder %s89, 0
      %s92 = sadd.s32 %s91, 1
      %s93 = scalar_select %p90, %s91, %s92
      %p96 = pneg %p90
      %p97 = scmp.eq.s32.totalorder %s15, 9
      %p98 = por %p96, %p97
      %p99 = scmp.ne.s32.totalorder %s91, %s94
      %p100 = scmp.eq.s32.totalorder %s15, 0
      %p101 = por %p99, %p100
      %p102 = scmp.ne.s32.totalorder %s91, %s94
      %p103 = scmp.eq.s32.totalorder %s20, 9
      %p104 = por %p102, %p103
      %p105 = scmp.ne.s32.totalorder %s94, %s95
      %p106 = scmp.eq.s32.totalorder %s20, 0
      %p107 = por %p105, %p106
      %p108 = scmp.ne.s32.totalorder %s94, %s95
      %p109 = scmp.eq.s32.totalorder %s21, 9
      %p110 = por %p108, %p109
      %p112 = scmp.ne.s32.totalorder %s95, %s111
      %p113 = scmp.eq.s32.totalorder %s21, 0
      %p114 = por %p112, %p113
      %s115 = ssub.s32 %s22, %s34
      %p116 = scmp.eq.s32.totalorder %s115, 0
      %s118 = sadd.s32 %s117, 1
      %s119 = scalar_select %p116, %s117, %s118
      %p122 = pneg %p116
      %p123 = scmp.eq.s32.totalorder %s15, 9
      %p124 = por %p122, %p123
      %p125 = scmp.ne.s32.totalorder %s117, %s120
      %p126 = scmp.eq.s32.totalorder %s15, 0
      %p127 = por %p125, %p126
      %p128 = scmp.ne.s32.totalorder %s117, %s120
      %p129 = scmp.eq.s32.totalorder %s20, 9
      %p130 = por %p128, %p129
      %p131 = scmp.ne.s32.totalorder %s120, %s121
      %p132 = scmp.eq.s32.totalorder %s20, 0
      %p133 = por %p131, %p132
      %p134 = scmp.ne.s32.totalorder %s120, %s121
      %p135 = scmp.eq.s32.totalorder %s21, 9
      %p136 = por %p134, %p135
      %p138 = scmp.ne.s32.totalorder %s121, %s137
      %p139 = scmp.eq.s32.totalorder %s21, 0
      %p140 = por %p138, %p139
      %p141 = scmp.le.s32.totalorder 1, %s15
      %p142 = scmp.lt.s32.totalorder %s15, 11
      %p143 = pnand %p141, %p142
      %p144 = pneg %p143
      // Predicated region
      $region9: #{cvae_prior_forward.1} parent=5 // pred_check
        _
      $region10: #{cvae_prior_forward.1} parent=5 // pred_check_branch
        %146 = sbr.rel (%p143) target = $region12
      $region11: #{cvae_prior_forward.1} parent=5 // pred_region
        %s147 = ssub.s32 %s15, 1
      $region12: #{cvae_prior_forward.1} parent=5 // pred_fallthru
        _
      %p148 = scmp.lt.s32.totalorder %s15, 10
      // Predicated region
      $region13: #{cvae_prior_forward.1} parent=5 // pred_check
        %p149 = pneg %p148
      $region14: #{cvae_prior_forward.1} parent=5 // pred_check_branch
        %151 = sbr.rel (%p149) target = $region16
      $region15: #{cvae_prior_forward.1} parent=5 // pred_region
        // Predicated region
        $region17: #{cvae_prior_forward.1} parent=15 // pred_check
          %p152 = pneg %p47
        $region18: #{cvae_prior_forward.1} parent=15 // pred_check_branch
          %154 = sbr.rel (%p152) target = $region20
        $region19: #{cvae_prior_forward.1} parent=15 // pred_region
          %s155 = sand.u32 %s37, 1
          %s156 = scalar_lea.sflag [#allocation4], %s155
          %s157 = sand.u32 %s37, 1
          %s158 = smul.addr %s157, 32
          %s159 = scalar_lea.vmem [#allocation3], %s158
          %s160 = smul.u32 4, %s23
          %s161 = ssub.s32 17, %s160
          %p162 = scmp.lt.s32.totalorder %s161, 4
          %s163 = scalar_select %p162, %s161, 4
          %s164 = smul.u32 128, %s163
          %s166 = ssub.s32 512, %s164
          %167 = vsyncadd %s156, %s166
          %p168 = scmp.ne.s32.totalorder 0, %s164
          %s169 = smul.addr %s160, 128
          %s170 = scalar_lea.hbm %s0, %s169
          %s171 = smul.u32 %s163, 8
          %s172 = sshll.u32 %s171, 4
          %s173 = sshll.u32 %s159, 4
          %s174 = int_to_ptr.vmem [resolvable:$true] %s173
          %176 = dma.hbm_to_vmem [thread:$0]  (%p168), %s170, %s172, %s174, %s156
        $region20: #{cvae_prior_forward.1} parent=15 // pred_fallthru
          _
        // Predicated region
        $region21: #{cvae_prior_forward.1} parent=15 // pred_check
          %p177 = pneg %p75
        $region22: #{cvae_prior_forward.1} parent=15 // pred_check_branch
          %179 = sbr.rel (%p177) target = $region24
        $region23: #{cvae_prior_forward.1} parent=15 // pred_region
          %s180 = sand.u32 %s15, 1
          %s181 = scalar_lea.sflag [#allocation6], %s180
          %s182 = sand.u32 %s65, 1
          %s183 = smul.addr %s182, 512
          %s184 = scalar_lea.vmem [#allocation5], %s183
          %s185 = smul.u32 64, %s23
          %s186 = smul.u32 2, %s22
          %s187 = ssub.s32 263, %s185
          %p188 = scmp.lt.s32.totalorder %s187, 64
          %s189 = scalar_select %p188, %s187, 64
          %s190 = smul.u32 64, %s189
          %s191 = smul.u32 %s190, 2
          %s193 = ssub.s32 8192, %s191
          %194 = vsyncadd %s181, %s193
          %p195 = scmp.ne.s32.totalorder 0, %s191
          %s196 = smul.addr %s185, 4
          %s197 = sadd.s32 %s186, %s196
          %s198 = smul.addr %s197, 64
          %s199 = scalar_lea.hbm %s1, %s198
          %s200 = smul.u32 8, %s189
          %s201 = sshll.u32 %s184, 4
          %s202 = int_to_ptr.vmem [resolvable:$true] %s201
          %s203 = sshll.u32 %s200, 4
          %207 = dma.hbm_to_vmem [thread:$0]  (%p195), %s199, %s203, %s202, %s181, 256, 128, 8
        $region24: #{cvae_prior_forward.1} parent=15 // pred_fallthru
          _
        // Predicated region
        $region25: #{cvae_prior_forward.1} parent=15 // pred_check
          %p208 = pneg %p101
        $region26: #{cvae_prior_forward.1} parent=15 // pred_check_branch
          %210 = sbr.rel (%p208) target = $region28
        $region27: #{cvae_prior_forward.1} parent=15 // pred_region
          %s211 = sand.u32 %s15, 1
          %s212 = scalar_lea.sflag [#allocation6], %s211
          %s213 = sand.u32 %s91, 1
          %s214 = smul.addr %s213, 2
          %s215 = scalar_lea.vmem [#allocation7], %s214
          %s216 = smul.u32 2, %s22
          %s218 = ssub.s32 32, 32
          %219 = vsyncadd %s212, %s218
          %s220 = smul.addr %s216, 16
          %s221 = scalar_lea.hbm %s2, %s220
          %s223 = sshll.u32 %s215, 4
          %s224 = int_to_ptr.vmem [resolvable:$true] %s223
          %226 = dma.hbm_to_vmem [thread:$0]  %s221, 32, %s224, %s212
        $region28: #{cvae_prior_forward.1} parent=15 // pred_fallthru
          _
      $region16: #{cvae_prior_forward.1} parent=5 // pred_fallthru
        _
      %p227 = scmp.le.s32.totalorder 1, %s15
      %p228 = scmp.lt.s32.totalorder %s15, 11
      %p229 = pnand %p227, %p228
      %p230 = pneg %p229
      // Predicated region
      $region29: #{cvae_prior_forward.1} parent=5 // pred_check
        _
      $region30: #{cvae_prior_forward.1} parent=5 // pred_check_branch
        %232 = sbr.rel (%p229) target = $region32
      $region31: #{cvae_prior_forward.1} parent=5 // pred_region
        %s233 = ssub.s32 %s15, 1
        %s234 = sand.u32 %s40, 1
        %s235 = scalar_lea.sflag [#allocation4], %s234
        %s236 = sand.u32 %s40, 1
        %s237 = smul.addr %s236, 32
        %s238 = scalar_lea.vmem [#allocation3], %s237
        // Predicated region
        $region33: #{cvae_prior_forward.1} parent=31 // pred_check
          %p239 = pneg %p53
        $region34: #{cvae_prior_forward.1} parent=31 // pred_check_branch
          %241 = sbr.rel (%p239) target = $region36
        $region35: #{cvae_prior_forward.1} parent=31 // pred_region
          %242 = dma.done %s235, 512
        $region36: #{cvae_prior_forward.1} parent=31 // pred_fallthru
          _
        %s243 = sand.u32 %s20, 1
        %s244 = scalar_lea.sflag [#allocation6], %s243
        %s245 = sand.u32 %s68, 1
        %s246 = smul.addr %s245, 512
        %s247 = scalar_lea.vmem [#allocation5], %s246
        // Predicated region
        $region37: #{cvae_prior_forward.1} parent=31 // pred_check
          %p248 = pneg %p81
        $region38: #{cvae_prior_forward.1} parent=31 // pred_check_branch
          %250 = sbr.rel (%p248) target = $region40
        $region39: #{cvae_prior_forward.1} parent=31 // pred_region
          %251 = dma.done %s244, 8192
        $region40: #{cvae_prior_forward.1} parent=31 // pred_fallthru
          _
        %s252 = sand.u32 %s20, 1
        %s253 = scalar_lea.sflag [#allocation6], %s252
        %s254 = sand.u32 %s94, 1
        %s255 = smul.addr %s254, 2
        %s256 = scalar_lea.vmem [#allocation7], %s255
        // Predicated region
        $region41: #{cvae_prior_forward.1} parent=31 // pred_check
          %p257 = pneg %p107
        $region42: #{cvae_prior_forward.1} parent=31 // pred_check_branch
          %259 = sbr.rel (%p257) target = $region44
        $region43: #{cvae_prior_forward.1} parent=31 // pred_region
          %260 = dma.done %s253, 32
        $region44: #{cvae_prior_forward.1} parent=31 // pred_fallthru
          _
        %s261 = sand.u32 %s40, 1
        %s262 = scalar_lea.sflag [#allocation4], %s261
        %s263 = sand.u32 %s40, 1
        %s264 = smul.addr %s263, 32
        %s265 = scalar_lea.vmem [#allocation3], %s264
        %p266 = pneg %p53
        %p267 = pneg %p50
        %s268 = sand.u32 %s20, 1
        %s269 = scalar_lea.sflag [#allocation6], %s268
        %s270 = sand.u32 %s68, 1
        %s271 = smul.addr %s270, 512
        %s272 = scalar_lea.vmem [#allocation5], %s271
        %p273 = pneg %p81
        %p274 = pneg %p78
        %s275 = sand.u32 %s20, 1
        %s276 = scalar_lea.sflag [#allocation6], %s275
        %s277 = sand.u32 %s94, 1
        %s278 = smul.addr %s277, 2
        %s279 = scalar_lea.vmem [#allocation7], %s278
        %p280 = pneg %p107
        %p281 = pneg %p104
        %p282 = pneg %p133
        %p283 = pneg %p130
        %s284 = smul.u32 2, %s24
        %p285 = scmp.lt.s32.totalorder %s284, 3
        %s286 = scalar_select %p285, %s284, 3
        %s287 = smul.addr %s286, 8
        %s288 = scalar_lea.vmem %s3, %s287
        %s289 = smul.u32 4, %s25
        %s290 = ssub.s32 17, %s289
        %p291 = scmp.lt.s32.totalorder %s290, 4
        %s292 = scalar_select %p291, %s290, 4
        %s293 = smul.u32 128, %s292
        %s294 = smul.u32 64, %s25
        %s295 = smul.u32 2, %s24
        %s296 = ssub.s32 263, %s294
        %p297 = scmp.lt.s32.totalorder %s296, 64
        %s298 = scalar_select %p297, %s296, 64
        %s299 = smul.u32 64, %s298
        %s300 = smul.u32 %s299, 2
        %s301 = smul.u32 2, %s24
        %s302 = smul.u32 2, %s24
        %p303 = scmp.lt.s32.totalorder %s302, 3
        %s304 = scalar_select %p303, %s302, 3
        %s305 = smul.addr %s304, 8
        %s306 = scalar_lea.vmem %s3, %s305
        %s307 = smul.u32 2, %s24
        %p311 = scmp.eq.s32.totalorder %s25, 0
        // Predicated region
        $region45: #{cvae_prior_forward.1} parent=31 // pred_check
          %p312 = pneg %p311
        $region46: #{cvae_prior_forward.1} parent=31 // pred_check_branch
          %314 = sbr.rel (%p312) target = $region48
        $region47: #{cvae_prior_forward.1} parent=31 // pred_region
          %315 = vst [vmem:[#allocation2] sm:$0xff] 0.0
          %316 = vst [vmem:[#allocation2 + $0x8] sm:$0xff] 0.0
        $region48: #{cvae_prior_forward.1} parent=31 // pred_fallthru
          _
        %v317 = vld [vmem:[%s238] sm:$0xff]
        %v318 = vld [vmem:[%s238 + $0x8] sm:$0xff]
        %v319 = vld [vmem:[%s238 + $0x10] sm:$0xff]
        %v320 = vld [vmem:[%s238 + $0x18] sm:$0xff]
        %v321 = vpack.c.bf16 %v317, %v317
        %v322 = vpack.c.bf16 %v318, %v318
        %v323 = vpack.c.bf16 %v319, %v319
        %v324 = vpack.c.bf16 %v320, %v320
        %p325 = scmp.lt.s32.totalorder %s25, 4
        // Predicated region
        $region49: #{cvae_prior_forward.1} parent=31 // pred_check
          %p326 = pneg %p325
        $region50: #{cvae_prior_forward.1} parent=31 // pred_check_branch
          %328 = sbr.rel (%p326) target = $region52
        $region51: #{cvae_prior_forward.1} parent=31 // pred_region
          %v329 = vld [vmem:[#allocation2] sm:$0xff]
          %v330 = vld [vmem:[#allocation2 + $0x8] sm:$0xff]
          %v331 = vld [vmem:[%s247] sm:$0xff]
          %v332 = vld [vmem:[%s247 + $0x8] sm:$0xff]
          %v333 = vld [vmem:[%s247 + $0x10] sm:$0xff]
          %v334 = vld [vmem:[%s247 + $0x18] sm:$0xff]
          %v335 = vld [vmem:[%s247 + $0x20] sm:$0xff]
          %v336 = vld [vmem:[%s247 + $0x28] sm:$0xff]
          %v337 = vld [vmem:[%s247 + $0x30] sm:$0xff]
          %v338 = vld [vmem:[%s247 + $0x38] sm:$0xff]
          %v339 = vld [vmem:[%s247 + $0x40] sm:$0xff]
          %v340 = vld [vmem:[%s247 + $0x48] sm:$0xff]
          %v341 = vld [vmem:[%s247 + $0x50] sm:$0xff]
          %v342 = vld [vmem:[%s247 + $0x58] sm:$0xff]
          %v343 = vld [vmem:[%s247 + $0x60] sm:$0xff]
          %v344 = vld [vmem:[%s247 + $0x68] sm:$0xff]
          %v345 = vld [vmem:[%s247 + $0x70] sm:$0xff]
          %v346 = vld [vmem:[%s247 + $0x78] sm:$0xff]
          %v347 = vld [vmem:[%s247 + $0x80] sm:$0xff]
          %v348 = vld [vmem:[%s247 + $0x88] sm:$0xff]
          %v349 = vld [vmem:[%s247 + $0x90] sm:$0xff]
          %v350 = vld [vmem:[%s247 + $0x98] sm:$0xff]
          %v351 = vld [vmem:[%s247 + $0xa0] sm:$0xff]
          %v352 = vld [vmem:[%s247 + $0xa8] sm:$0xff]
          %v353 = vld [vmem:[%s247 + $0xb0] sm:$0xff]
          %v354 = vld [vmem:[%s247 + $0xb8] sm:$0xff]
          %v355 = vld [vmem:[%s247 + $0xc0] sm:$0xff]
          %v356 = vld [vmem:[%s247 + $0xc8] sm:$0xff]
          %v357 = vld [vmem:[%s247 + $0xd0] sm:$0xff]
          %v358 = vld [vmem:[%s247 + $0xd8] sm:$0xff]
          %v359 = vld [vmem:[%s247 + $0xe0] sm:$0xff]
          %v360 = vld [vmem:[%s247 + $0xe8] sm:$0xff]
          %v361 = vld [vmem:[%s247 + $0xf0] sm:$0xff]
          %v362 = vld [vmem:[%s247 + $0xf8] sm:$0xff]
          %v363 = vld [vmem:[%s247 + $0x100] sm:$0xff]
          %v364 = vld [vmem:[%s247 + $0x108] sm:$0xff]
          %v365 = vld [vmem:[%s247 + $0x110] sm:$0xff]
          %v366 = vld [vmem:[%s247 + $0x118] sm:$0xff]
          %v367 = vld [vmem:[%s247 + $0x120] sm:$0xff]
          %v368 = vld [vmem:[%s247 + $0x128] sm:$0xff]
          %v369 = vld [vmem:[%s247 + $0x130] sm:$0xff]
          %v370 = vld [vmem:[%s247 + $0x138] sm:$0xff]
          %v371 = vld [vmem:[%s247 + $0x140] sm:$0xff]
          %v372 = vld [vmem:[%s247 + $0x148] sm:$0xff]
          %v373 = vld [vmem:[%s247 + $0x150] sm:$0xff]
          %v374 = vld [vmem:[%s247 + $0x158] sm:$0xff]
          %v375 = vld [vmem:[%s247 + $0x160] sm:$0xff]
          %v376 = vld [vmem:[%s247 + $0x168] sm:$0xff]
          %v377 = vld [vmem:[%s247 + $0x170] sm:$0xff]
          %v378 = vld [vmem:[%s247 + $0x178] sm:$0xff]
          %v379 = vld [vmem:[%s247 + $0x180] sm:$0xff]
          %v380 = vld [vmem:[%s247 + $0x188] sm:$0xff]
          %v381 = vld [vmem:[%s247 + $0x190] sm:$0xff]
          %v382 = vld [vmem:[%s247 + $0x198] sm:$0xff]
          %v383 = vld [vmem:[%s247 + $0x1a0] sm:$0xff]
          %v384 = vld [vmem:[%s247 + $0x1a8] sm:$0xff]
          %v385 = vld [vmem:[%s247 + $0x1b0] sm:$0xff]
          %v386 = vld [vmem:[%s247 + $0x1b8] sm:$0xff]
          %v387 = vld [vmem:[%s247 + $0x1c0] sm:$0xff]
          %v388 = vld [vmem:[%s247 + $0x1c8] sm:$0xff]
          %v389 = vld [vmem:[%s247 + $0x1d0] sm:$0xff]
          %v390 = vld [vmem:[%s247 + $0x1d8] sm:$0xff]
          %v391 = vld [vmem:[%s247 + $0x1e0] sm:$0xff]
          %v392 = vld [vmem:[%s247 + $0x1e8] sm:$0xff]
          %v393 = vld [vmem:[%s247 + $0x1f0] sm:$0xff]
          %v394 = vld [vmem:[%s247 + $0x1f8] sm:$0xff]
          %v459 = vunpack.c.l.b16 %v331
          %v460 = vunpack.c.h.b16 %v331
          %v461 = vunpack.c.l.b16 %v332
          %v462 = vunpack.c.h.b16 %v332
          %v463 = vunpack.c.l.b16 %v333
          %v464 = vunpack.c.h.b16 %v333
          %v465 = vunpack.c.l.b16 %v334
          %v466 = vunpack.c.h.b16 %v334
          %v467 = vunpack.c.l.b16 %v335
          %v468 = vunpack.c.h.b16 %v335
          %v469 = vunpack.c.l.b16 %v336
          %v470 = vunpack.c.h.b16 %v336
          %v471 = vunpack.c.l.b16 %v337
          %v472 = vunpack.c.h.b16 %v337
          %v473 = vunpack.c.l.b16 %v338
          %v474 = vunpack.c.h.b16 %v338
          %v475 = vunpack.c.l.b16 %v339
          %v476 = vunpack.c.h.b16 %v339
          %v477 = vunpack.c.l.b16 %v340
          %v478 = vunpack.c.h.b16 %v340
          %v479 = vunpack.c.l.b16 %v341
          %v480 = vunpack.c.h.b16 %v341
          %v481 = vunpack.c.l.b16 %v342
          %v482 = vunpack.c.h.b16 %v342
          %v483 = vunpack.c.l.b16 %v343
          %v484 = vunpack.c.h.b16 %v343
          %v485 = vunpack.c.l.b16 %v344
          %v486 = vunpack.c.h.b16 %v344
          %v487 = vunpack.c.l.b16 %v345
          %v488 = vunpack.c.h.b16 %v345
          %v489 = vunpack.c.l.b16 %v346
          %v490 = vunpack.c.h.b16 %v346
          %v491 = vunpack.c.l.b16 %v347
          %v492 = vunpack.c.h.b16 %v347
          %v493 = vunpack.c.l.b16 %v348
          %v494 = vunpack.c.h.b16 %v348
          %v495 = vunpack.c.l.b16 %v349
          %v496 = vunpack.c.h.b16 %v349
          %v497 = vunpack.c.l.b16 %v350
          %v498 = vunpack.c.h.b16 %v350
          %v499 = vunpack.c.l.b16 %v351
          %v500 = vunpack.c.h.b16 %v351
          %v501 = vunpack.c.l.b16 %v352
          %v502 = vunpack.c.h.b16 %v352
          %v503 = vunpack.c.l.b16 %v353
          %v504 = vunpack.c.h.b16 %v353
          %v505 = vunpack.c.l.b16 %v354
          %v506 = vunpack.c.h.b16 %v354
          %v507 = vunpack.c.l.b16 %v355
          %v508 = vunpack.c.h.b16 %v355
          %v509 = vunpack.c.l.b16 %v356
          %v510 = vunpack.c.h.b16 %v356
          %v511 = vunpack.c.l.b16 %v357
          %v512 = vunpack.c.h.b16 %v357
          %v513 = vunpack.c.l.b16 %v358
          %v514 = vunpack.c.h.b16 %v358
          %v515 = vunpack.c.l.b16 %v359
          %v516 = vunpack.c.h.b16 %v359
          %v517 = vunpack.c.l.b16 %v360
          %v518 = vunpack.c.h.b16 %v360
          %v519 = vunpack.c.l.b16 %v361
          %v520 = vunpack.c.h.b16 %v361
          %v521 = vunpack.c.l.b16 %v362
          %v522 = vunpack.c.h.b16 %v362
          %v523 = vunpack.c.l.b16 %v363
          %v524 = vunpack.c.h.b16 %v363
          %v525 = vunpack.c.l.b16 %v364
          %v526 = vunpack.c.h.b16 %v364
          %v527 = vunpack.c.l.b16 %v365
          %v528 = vunpack.c.h.b16 %v365
          %v529 = vunpack.c.l.b16 %v366
          %v530 = vunpack.c.h.b16 %v366
          %v531 = vunpack.c.l.b16 %v367
          %v532 = vunpack.c.h.b16 %v367
          %v533 = vunpack.c.l.b16 %v368
          %v534 = vunpack.c.h.b16 %v368
          %v535 = vunpack.c.l.b16 %v369
          %v536 = vunpack.c.h.b16 %v369
          %v537 = vunpack.c.l.b16 %v370
          %v538 = vunpack.c.h.b16 %v370
          %v539 = vunpack.c.l.b16 %v371
          %v540 = vunpack.c.h.b16 %v371
          %v541 = vunpack.c.l.b16 %v372
          %v542 = vunpack.c.h.b16 %v372
          %v543 = vunpack.c.l.b16 %v373
          %v544 = vunpack.c.h.b16 %v373
          %v545 = vunpack.c.l.b16 %v374
          %v546 = vunpack.c.h.b16 %v374
          %v547 = vunpack.c.l.b16 %v375
          %v548 = vunpack.c.h.b16 %v375
          %v549 = vunpack.c.l.b16 %v376
          %v550 = vunpack.c.h.b16 %v376
          %v551 = vunpack.c.l.b16 %v377
          %v552 = vunpack.c.h.b16 %v377
          %v553 = vunpack.c.l.b16 %v378
          %v554 = vunpack.c.h.b16 %v378
          %v555 = vunpack.c.l.b16 %v379
          %v556 = vunpack.c.h.b16 %v379
          %v557 = vunpack.c.l.b16 %v380
          %v558 = vunpack.c.h.b16 %v380
          %v559 = vunpack.c.l.b16 %v381
          %v560 = vunpack.c.h.b16 %v381
          %v561 = vunpack.c.l.b16 %v382
          %v562 = vunpack.c.h.b16 %v382
          %v563 = vunpack.c.l.b16 %v383
          %v564 = vunpack.c.h.b16 %v383
          %v565 = vunpack.c.l.b16 %v384
          %v566 = vunpack.c.h.b16 %v384
          %v567 = vunpack.c.l.b16 %v385
          %v568 = vunpack.c.h.b16 %v385
          %v569 = vunpack.c.l.b16 %v386
          %v570 = vunpack.c.h.b16 %v386
          %v571 = vunpack.c.l.b16 %v387
          %v572 = vunpack.c.h.b16 %v387
          %v573 = vunpack.c.l.b16 %v388
          %v574 = vunpack.c.h.b16 %v388
          %v575 = vunpack.c.l.b16 %v389
          %v576 = vunpack.c.h.b16 %v389
          %v577 = vunpack.c.l.b16 %v390
          %v578 = vunpack.c.h.b16 %v390
          %v579 = vunpack.c.l.b16 %v391
          %v580 = vunpack.c.h.b16 %v391
          %v581 = vunpack.c.l.b16 %v392
          %v582 = vunpack.c.h.b16 %v392
          %v583 = vunpack.c.l.b16 %v393
          %v584 = vunpack.c.h.b16 %v393
          %v585 = vunpack.c.l.b16 %v394
          %v586 = vunpack.c.h.b16 %v394
          %v587 = vpack.c.b16 %v461, %v459
          %v588 = vpack.c.b16 %v462, %v460
          %v589 = vpack.c.b16 %v465, %v463
          %v590 = vpack.c.b16 %v466, %v464
          %v591 = vpack.c.b16 %v469, %v467
          %v592 = vpack.c.b16 %v470, %v468
          %v593 = vpack.c.b16 %v473, %v471
          %v594 = vpack.c.b16 %v474, %v472
          %v595 = vpack.c.b16 %v477, %v475
          %v596 = vpack.c.b16 %v478, %v476
          %v597 = vpack.c.b16 %v481, %v479
          %v598 = vpack.c.b16 %v482, %v480
          %v599 = vpack.c.b16 %v485, %v483
          %v600 = vpack.c.b16 %v486, %v484
          %v601 = vpack.c.b16 %v489, %v487
          %v602 = vpack.c.b16 %v490, %v488
          %v603 = vpack.c.b16 %v493, %v491
          %v604 = vpack.c.b16 %v494, %v492
          %v605 = vpack.c.b16 %v497, %v495
          %v606 = vpack.c.b16 %v498, %v496
          %v607 = vpack.c.b16 %v501, %v499
          %v608 = vpack.c.b16 %v502, %v500
          %v609 = vpack.c.b16 %v505, %v503
          %v610 = vpack.c.b16 %v506, %v504
          %v611 = vpack.c.b16 %v509, %v507
          %v612 = vpack.c.b16 %v510, %v508
          %v613 = vpack.c.b16 %v513, %v511
          %v614 = vpack.c.b16 %v514, %v512
          %v615 = vpack.c.b16 %v517, %v515
          %v616 = vpack.c.b16 %v518, %v516
          %v617 = vpack.c.b16 %v521, %v519
          %v618 = vpack.c.b16 %v522, %v520
          %v619 = vpack.c.b16 %v525, %v523
          %v620 = vpack.c.b16 %v526, %v524
          %v621 = vpack.c.b16 %v529, %v527
          %v622 = vpack.c.b16 %v530, %v528
          %v623 = vpack.c.b16 %v533, %v531
          %v624 = vpack.c.b16 %v534, %v532
          %v625 = vpack.c.b16 %v537, %v535
          %v626 = vpack.c.b16 %v538, %v536
          %v627 = vpack.c.b16 %v541, %v539
          %v628 = vpack.c.b16 %v542, %v540
          %v629 = vpack.c.b16 %v545, %v543
          %v630 = vpack.c.b16 %v546, %v544
          %v631 = vpack.c.b16 %v549, %v547
          %v632 = vpack.c.b16 %v550, %v548
          %v633 = vpack.c.b16 %v553, %v551
          %v634 = vpack.c.b16 %v554, %v552
          %v635 = vpack.c.b16 %v557, %v555
          %v636 = vpack.c.b16 %v558, %v556
          %v637 = vpack.c.b16 %v561, %v559
          %v638 = vpack.c.b16 %v562, %v560
          %v639 = vpack.c.b16 %v565, %v563
          %v640 = vpack.c.b16 %v566, %v564
          %v641 = vpack.c.b16 %v569, %v567
          %v642 = vpack.c.b16 %v570, %v568
          %v643 = vpack.c.b16 %v573, %v571
          %v644 = vpack.c.b16 %v574, %v572
          %v645 = vpack.c.b16 %v577, %v575
          %v646 = vpack.c.b16 %v578, %v576
          %v647 = vpack.c.b16 %v581, %v579
          %v648 = vpack.c.b16 %v582, %v580
          %v649 = vpack.c.b16 %v585, %v583
          %v650 = vpack.c.b16 %v586, %v584
          %715 = vmatprep.subr.bf16.mxu0 %v588
          %716 = vmatpush1.bf16.msra.mxu0 %v587
          %717 = vmatprep.subr.bf16.mxu0 %v590
          %718 = vmatpush1.bf16.msra.mxu0 %v589
          %719 = vmatprep.subr.bf16.mxu0 %v592
          %720 = vmatpush1.bf16.msra.mxu0 %v591
          %721 = vmatprep.subr.bf16.mxu0 %v594
          %722 = vmatpush1.bf16.msra.mxu0 %v593
          %723 = vmatprep.subr.bf16.mxu0 %v596
          %724 = vmatpush1.bf16.msra.mxu0 %v595
          %725 = vmatprep.subr.bf16.mxu0 %v598
          %726 = vmatpush1.bf16.msra.mxu0 %v597
          %727 = vmatprep.subr.bf16.mxu0 %v600
          %728 = vmatpush1.bf16.msra.mxu0 %v599
          %729 = vmatprep.subr.bf16.mxu0 %v602
          %730 = vmatpush1.bf16.msra.mxu0 %v601
          %731 = vmatprep.subr.bf16.mxu0 %v604
          %732 = vmatpush1.bf16.msra.mxu0 %v603
          %733 = vmatprep.subr.bf16.mxu0 %v606
          %734 = vmatpush1.bf16.msra.mxu0 %v605
          %735 = vmatprep.subr.bf16.mxu0 %v608
          %736 = vmatpush1.bf16.msra.mxu0 %v607
          %737 = vmatprep.subr.bf16.mxu0 %v610
          %738 = vmatpush1.bf16.msra.mxu0 %v609
          %739 = vmatprep.subr.bf16.mxu0 %v612
          %740 = vmatpush1.bf16.msra.mxu0 %v611
          %741 = vmatprep.subr.bf16.mxu0 %v614
          %742 = vmatpush1.bf16.msra.mxu0 %v613
          %743 = vmatprep.subr.bf16.mxu0 %v616
          %744 = vmatpush1.bf16.msra.mxu0 %v615
          %745 = vmatprep.subr.bf16.mxu0 %v618
          %746 = vmatpush1.bf16.msra.mxu0 %v617
          %747 = vmatprep.mubr.bf16.mxu0 %v322
          %748 = vmatmul.mubr.bf16.gmra.mrb[0].mxu0 %v321
          %v749 = vpop.f32.mrb[0].mxu0
          %v750 = vadd.f32 0.0, %v749
          %v751 = vpop.f32.mrb[0].mxu0
          %v752 = vadd.f32 0.0, %v751
          %v753 = vpop.f32.mrb[0].mxu0
          %v754 = vpop.f32.mrb[0].mxu0
          %755 = vdwg.mxu0
          %756 = vmatprep.subr.bf16.mxu0 %v620
          %757 = vmatpush1.bf16.msra.mxu0 %v619
          %758 = vmatprep.subr.bf16.mxu0 %v622
          %759 = vmatpush1.bf16.msra.mxu0 %v621
          %760 = vmatprep.subr.bf16.mxu0 %v624
          %761 = vmatpush1.bf16.msra.mxu0 %v623
          %762 = vmatprep.subr.bf16.mxu0 %v626
          %763 = vmatpush1.bf16.msra.mxu0 %v625
          %764 = vmatprep.subr.bf16.mxu0 %v628
          %765 = vmatpush1.bf16.msra.mxu0 %v627
          %766 = vmatprep.subr.bf16.mxu0 %v630
          %767 = vmatpush1.bf16.msra.mxu0 %v629
          %768 = vmatprep.subr.bf16.mxu0 %v632
          %769 = vmatpush1.bf16.msra.mxu0 %v631
          %770 = vmatprep.subr.bf16.mxu0 %v634
          %771 = vmatpush1.bf16.msra.mxu0 %v633
          %772 = vmatprep.subr.bf16.mxu0 %v636
          %773 = vmatpush1.bf16.msra.mxu0 %v635
          %774 = vmatprep.subr.bf16.mxu0 %v638
          %775 = vmatpush1.bf16.msra.mxu0 %v637
          %776 = vmatprep.subr.bf16.mxu0 %v640
          %777 = vmatpush1.bf16.msra.mxu0 %v639
          %778 = vmatprep.subr.bf16.mxu0 %v642
          %779 = vmatpush1.bf16.msra.mxu0 %v641
          %780 = vmatprep.subr.bf16.mxu0 %v644
          %781 = vmatpush1.bf16.msra.mxu0 %v643
          %782 = vmatprep.subr.bf16.mxu0 %v646
          %783 = vmatpush1.bf16.msra.mxu0 %v645
          %784 = vmatprep.subr.bf16.mxu0 %v648
          %785 = vmatpush1.bf16.msra.mxu0 %v647
          %786 = vmatprep.subr.bf16.mxu0 %v650
          %787 = vmatpush1.bf16.msra.mxu0 %v649
          %788 = vmatprep.mubr.bf16.mxu0 %v324
          %789 = vmatmul.mubr.bf16.gmra.mrb[0].mxu0 %v323
          %v790 = vpop.f32.mrb[0].mxu0
          %v791 = vadd.f32 %v750, %v790
          %v792 = vpop.f32.mrb[0].mxu0
          %v793 = vadd.f32 %v752, %v792
          %v794 = vpop.f32.mrb[0].mxu0
          %v795 = vpop.f32.mrb[0].mxu0
          %796 = vdwg.mxu0
          %v797 = vadd.f32 %v329, %v791
          %v798 = vadd.f32 %v330, %v793
          %799 = vst [vmem:[#allocation2] sm:$0xff] %v797
          %800 = vst [vmem:[#allocation2 + $0x8] sm:$0xff] %v798
        $region52: #{cvae_prior_forward.1} parent=31 // pred_fallthru
          _
        %p801 = scmp.eq.s32.totalorder %s25, 4
        // Predicated region
        $region53: #{cvae_prior_forward.1} parent=31 // pred_check
          %p802 = pneg %p801
        $region54: #{cvae_prior_forward.1} parent=31 // pred_check_branch
          %804 = sbr.rel (%p802) target = $region56
        $region55: #{cvae_prior_forward.1} parent=31 // pred_region
          %v805 = vlaneseq
          %v806 = vand.u32 %v805, 127
          %v807 = vadd.s32 %v806, 128
          %v808 = vadd.s32 %v806, 256
          %v809 = vadd.s32 %v806, 384
          %s810 = smul.u32 %s25, 512
          %v811 = vstv %s810
          %v812 = vadd.s32 %v811, %v806
          %v813 = vadd.s32 %v811, %v807
          %v814 = vadd.s32 %v811, %v808
          %v815 = vadd.s32 %v811, %v809
          %vm816 = vcmp.lt.s32.totalorder %v812, 2100
          %vm817 = vcmp.lt.s32.totalorder %v813, 2100
          %vm818 = vcmp.lt.s32.totalorder %v814, 2100
          %vm819 = vcmp.lt.s32.totalorder %v815, 2100
          %vm820 = vmpackc.low %vm817, %vm816
          %vm821 = vmpackc.low %vm819, %vm818
          %v822 = vsel %vm820, 65537, 0
          %v823 = vsel %vm821, 65537, 0
          %v824 = vlaneseq
          %v825 = vshrl.u32 %v824, 7
          %v826 = vsub.s32 0, %v825
          %v827 = vrot.slane %v822, %v826
          %v828 = vlaneseq
          %v829 = vshrl.u32 %v828, 7
          %v830 = vsub.s32 4, %v829
          %v831 = vrot.slane %v822, %v830
          %v832 = vlaneseq
          %v833 = vshrl.u32 %v832, 7
          %v834 = vsub.s32 0, %v833
          %v835 = vrot.slane %v823, %v834
          %v836 = vlaneseq
          %v837 = vshrl.u32 %v836, 7
          %v838 = vsub.s32 4, %v837
          %v839 = vrot.slane %v823, %v838
          %vm840 = vcmp.ne.s16.totalorder %v827, 0
          %vm841 = vcmp.ne.s16.totalorder %v831, 0
          %vm842 = vcmp.ne.s16.totalorder %v835, 0
          %vm843 = vcmp.ne.s16.totalorder %v839, 0
          %v844 = vsel %vm840, %v321, 0
          %v845 = vsel %vm841, %v322, 0
          %v846 = vsel %vm842, %v323, 0
          %v847 = vsel %vm843, %v324, 0
          %v848 = vlaneseq
          %v849 = vshrl.u32 %v848, 7
          %v850 = vadd.s32 %v849, 8
          %v851 = vadd.s32 %v849, 16
          %v852 = vadd.s32 %v849, 24
          %v853 = vadd.s32 %v849, 32
          %v854 = vadd.s32 %v849, 40
          %v855 = vadd.s32 %v849, 48
          %v856 = vadd.s32 %v849, 56
          %v857 = vadd.s32 %v849, 64
          %v858 = vadd.s32 %v849, 72
          %v859 = vadd.s32 %v849, 80
          %v860 = vadd.s32 %v849, 88
          %v861 = vadd.s32 %v849, 96
          %v862 = vadd.s32 %v849, 104
          %v863 = vadd.s32 %v849, 112
          %v864 = vadd.s32 %v849, 120
          %v865 = vadd.s32 %v849, 128
          %v866 = vadd.s32 %v849, 136
          %v867 = vadd.s32 %v849, 144
          %v868 = vadd.s32 %v849, 152
          %v869 = vadd.s32 %v849, 160
          %v870 = vadd.s32 %v849, 168
          %v871 = vadd.s32 %v849, 176
          %v872 = vadd.s32 %v849, 184
          %v873 = vadd.s32 %v849, 192
          %v874 = vadd.s32 %v849, 200
          %v875 = vadd.s32 %v849, 208
          %v876 = vadd.s32 %v849, 216
          %v877 = vadd.s32 %v849, 224
          %v878 = vadd.s32 %v849, 232
          %v879 = vadd.s32 %v849, 240
          %v880 = vadd.s32 %v849, 248
          %v881 = vadd.s32 %v849, 256
          %v882 = vadd.s32 %v849, 264
          %v883 = vadd.s32 %v849, 272
          %v884 = vadd.s32 %v849, 280
          %v885 = vadd.s32 %v849, 288
          %v886 = vadd.s32 %v849, 296
          %v887 = vadd.s32 %v849, 304
          %v888 = vadd.s32 %v849, 312
          %v889 = vadd.s32 %v849, 320
          %v890 = vadd.s32 %v849, 328
          %v891 = vadd.s32 %v849, 336
          %v892 = vadd.s32 %v849, 344
          %v893 = vadd.s32 %v849, 352
          %v894 = vadd.s32 %v849, 360
          %v895 = vadd.s32 %v849, 368
          %v896 = vadd.s32 %v849, 376
          %v897 = vadd.s32 %v849, 384
          %v898 = vadd.s32 %v849, 392
          %v899 = vadd.s32 %v849, 400
          %v900 = vadd.s32 %v849, 408
          %v901 = vadd.s32 %v849, 416
          %v902 = vadd.s32 %v849, 424
          %v903 = vadd.s32 %v849, 432
          %v904 = vadd.s32 %v849, 440
          %v905 = vadd.s32 %v849, 448
          %v906 = vadd.s32 %v849, 456
          %v907 = vadd.s32 %v849, 464
          %v908 = vadd.s32 %v849, 472
          %v909 = vadd.s32 %v849, 480
          %v910 = vadd.s32 %v849, 488
          %v911 = vadd.s32 %v849, 496
          %v912 = vadd.s32 %v849, 504
          %v913 = vadd.s32 %v811, %v849
          %v914 = vadd.s32 %v811, %v850
          %v915 = vadd.s32 %v811, %v851
          %v916 = vadd.s32 %v811, %v852
          %v917 = vadd.s32 %v811, %v853
          %v918 = vadd.s32 %v811, %v854
          %v919 = vadd.s32 %v811, %v855
          %v920 = vadd.s32 %v811, %v856
          %v921 = vadd.s32 %v811, %v857
          %v922 = vadd.s32 %v811, %v858
          %v923 = vadd.s32 %v811, %v859
          %v924 = vadd.s32 %v811, %v860
          %v925 = vadd.s32 %v811, %v861
          %v926 = vadd.s32 %v811, %v862
          %v927 = vadd.s32 %v811, %v863
          %v928 = vadd.s32 %v811, %v864
          %v929 = vadd.s32 %v811, %v865
          %v930 = vadd.s32 %v811, %v866
          %v931 = vadd.s32 %v811, %v867
          %v932 = vadd.s32 %v811, %v868
          %v933 = vadd.s32 %v811, %v869
          %v934 = vadd.s32 %v811, %v870
          %v935 = vadd.s32 %v811, %v871
          %v936 = vadd.s32 %v811, %v872
          %v937 = vadd.s32 %v811, %v873
          %v938 = vadd.s32 %v811, %v874
          %v939 = vadd.s32 %v811, %v875
          %v940 = vadd.s32 %v811, %v876
          %v941 = vadd.s32 %v811, %v877
          %v942 = vadd.s32 %v811, %v878
          %v943 = vadd.s32 %v811, %v879
          %v944 = vadd.s32 %v811, %v880
          %v945 = vadd.s32 %v811, %v881
          %v946 = vadd.s32 %v811, %v882
          %v947 = vadd.s32 %v811, %v883
          %v948 = vadd.s32 %v811, %v884
          %v949 = vadd.s32 %v811, %v885
          %v950 = vadd.s32 %v811, %v886
          %v951 = vadd.s32 %v811, %v887
          %v952 = vadd.s32 %v811, %v888
          %v953 = vadd.s32 %v811, %v889
          %v954 = vadd.s32 %v811, %v890
          %v955 = vadd.s32 %v811, %v891
          %v956 = vadd.s32 %v811, %v892
          %v957 = vadd.s32 %v811, %v893
          %v958 = vadd.s32 %v811, %v894
          %v959 = vadd.s32 %v811, %v895
          %v960 = vadd.s32 %v811, %v896
          %v961 = vadd.s32 %v811, %v897
          %v962 = vadd.s32 %v811, %v898
          %v963 = vadd.s32 %v811, %v899
          %v964 = vadd.s32 %v811, %v900
          %v965 = vadd.s32 %v811, %v901
          %v966 = vadd.s32 %v811, %v902
          %v967 = vadd.s32 %v811, %v903
          %v968 = vadd.s32 %v811, %v904
          %v969 = vadd.s32 %v811, %v905
          %v970 = vadd.s32 %v811, %v906
          %v971 = vadd.s32 %v811, %v907
          %v972 = vadd.s32 %v811, %v908
          %v973 = vadd.s32 %v811, %v909
          %v974 = vadd.s32 %v811, %v910
          %v975 = vadd.s32 %v811, %v911
          %v976 = vadd.s32 %v811, %v912
          %vm977 = vcmp.lt.s32.totalorder %v913, 2100
          %vm978 = vcmp.lt.s32.totalorder %v914, 2100
          %vm979 = vcmp.lt.s32.totalorder %v915, 2100
          %vm980 = vcmp.lt.s32.totalorder %v916, 2100
          %vm981 = vcmp.lt.s32.totalorder %v917, 2100
          %vm982 = vcmp.lt.s32.totalorder %v918, 2100
          %vm983 = vcmp.lt.s32.totalorder %v919, 2100
          %vm984 = vcmp.lt.s32.totalorder %v920, 2100
          %vm985 = vcmp.lt.s32.totalorder %v921, 2100
          %vm986 = vcmp.lt.s32.totalorder %v922, 2100
          %vm987 = vcmp.lt.s32.totalorder %v923, 2100
          %vm988 = vcmp.lt.s32.totalorder %v924, 2100
          %vm989 = vcmp.lt.s32.totalorder %v925, 2100
          %vm990 = vcmp.lt.s32.totalorder %v926, 2100
          %vm991 = vcmp.lt.s32.totalorder %v927, 2100
          %vm992 = vcmp.lt.s32.totalorder %v928, 2100
          %vm993 = vcmp.lt.s32.totalorder %v929, 2100
          %vm994 = vcmp.lt.s32.totalorder %v930, 2100
          %vm995 = vcmp.lt.s32.totalorder %v931, 2100
          %vm996 = vcmp.lt.s32.totalorder %v932, 2100
          %vm997 = vcmp.lt.s32.totalorder %v933, 2100
          %vm998 = vcmp.lt.s32.totalorder %v934, 2100
          %vm999 = vcmp.lt.s32.totalorder %v935, 2100
          %vm1000 = vcmp.lt.s32.totalorder %v936, 2100
          %vm1001 = vcmp.lt.s32.totalorder %v937, 2100
          %vm1002 = vcmp.lt.s32.totalorder %v938, 2100
          %vm1003 = vcmp.lt.s32.totalorder %v939, 2100
          %vm1004 = vcmp.lt.s32.totalorder %v940, 2100
          %vm1005 = vcmp.lt.s32.totalorder %v941, 2100
          %vm1006 = vcmp.lt.s32.totalorder %v942, 2100
          %vm1007 = vcmp.lt.s32.totalorder %v943, 2100
          %vm1008 = vcmp.lt.s32.totalorder %v944, 2100
          %vm1009 = vcmp.lt.s32.totalorder %v945, 2100
          %vm1010 = vcmp.lt.s32.totalorder %v946, 2100
          %vm1011 = vcmp.lt.s32.totalorder %v947, 2100
          %vm1012 = vcmp.lt.s32.totalorder %v948, 2100
          %vm1013 = vcmp.lt.s32.totalorder %v949, 2100
          %vm1014 = vcmp.lt.s32.totalorder %v950, 2100
          %vm1015 = vcmp.lt.s32.totalorder %v951, 2100
          %vm1016 = vcmp.lt.s32.totalorder %v952, 2100
          %vm1017 = vcmp.lt.s32.totalorder %v953, 2100
          %vm1018 = vcmp.lt.s32.totalorder %v954, 2100
          %vm1019 = vcmp.lt.s32.totalorder %v955, 2100
          %vm1020 = vcmp.lt.s32.totalorder %v956, 2100
          %vm1021 = vcmp.lt.s32.totalorder %v957, 2100
          %vm1022 = vcmp.lt.s32.totalorder %v958, 2100
          %vm1023 = vcmp.lt.s32.totalorder %v959, 2100
          %vm1024 = vcmp.lt.s32.totalorder %v960, 2100
          %vm1025 = vcmp.lt.s32.totalorder %v961, 2100
          %vm1026 = vcmp.lt.s32.totalorder %v962, 2100
          %vm1027 = vcmp.lt.s32.totalorder %v963, 2100
          %vm1028 = vcmp.lt.s32.totalorder %v964, 2100
          %vm1029 = vcmp.lt.s32.totalorder %v965, 2100
          %vm1030 = vcmp.lt.s32.totalorder %v966, 2100
          %vm1031 = vcmp.lt.s32.totalorder %v967, 2100
          %vm1032 = vcmp.lt.s32.totalorder %v968, 2100
          %vm1033 = vcmp.lt.s32.totalorder %v969, 2100
          %vm1034 = vcmp.lt.s32.totalorder %v970, 2100
          %vm1035 = vcmp.lt.s32.totalorder %v971, 2100
          %vm1036 = vcmp.lt.s32.totalorder %v972, 2100
          %vm1037 = vcmp.lt.s32.totalorder %v973, 2100
          %vm1038 = vcmp.lt.s32.totalorder %v974, 2100
          %vm1039 = vcmp.lt.s32.totalorder %v975, 2100
          %vm1040 = vcmp.lt.s32.totalorder %v976, 2100
          %v1041 = vld [vmem:[%s247] sm:$0xff]
          %v1042 = vld [vmem:[%s247 + $0x8] sm:$0xff]
          %v1043 = vld [vmem:[%s247 + $0x10] sm:$0xff]
          %v1044 = vld [vmem:[%s247 + $0x18] sm:$0xff]
          %v1045 = vld [vmem:[%s247 + $0x20] sm:$0xff]
          %v1046 = vld [vmem:[%s247 + $0x28] sm:$0xff]
          %v1047 = vld [vmem:[%s247 + $0x30] sm:$0xff]
          %v1048 = vld [vmem:[%s247 + $0x38] sm:$0xff]
          %v1049 = vld [vmem:[%s247 + $0x40] sm:$0xff]
          %v1050 = vld [vmem:[%s247 + $0x48] sm:$0xff]
          %v1051 = vld [vmem:[%s247 + $0x50] sm:$0xff]
          %v1052 = vld [vmem:[%s247 + $0x58] sm:$0xff]
          %v1053 = vld [vmem:[%s247 + $0x60] sm:$0xff]
          %v1054 = vld [vmem:[%s247 + $0x68] sm:$0xff]
          %v1055 = vld [vmem:[%s247 + $0x70] sm:$0xff]
          %v1056 = vld [vmem:[%s247 + $0x78] sm:$0xff]
          %v1057 = vld [vmem:[%s247 + $0x80] sm:$0xff]
          %v1058 = vld [vmem:[%s247 + $0x88] sm:$0xff]
          %v1059 = vld [vmem:[%s247 + $0x90] sm:$0xff]
          %v1060 = vld [vmem:[%s247 + $0x98] sm:$0xff]
          %v1061 = vld [vmem:[%s247 + $0xa0] sm:$0xff]
          %v1062 = vld [vmem:[%s247 + $0xa8] sm:$0xff]
          %v1063 = vld [vmem:[%s247 + $0xb0] sm:$0xff]
          %v1064 = vld [vmem:[%s247 + $0xb8] sm:$0xff]
          %v1065 = vld [vmem:[%s247 + $0xc0] sm:$0xff]
          %v1066 = vld [vmem:[%s247 + $0xc8] sm:$0xff]
          %v1067 = vld [vmem:[%s247 + $0xd0] sm:$0xff]
          %v1068 = vld [vmem:[%s247 + $0xd8] sm:$0xff]
          %v1069 = vld [vmem:[%s247 + $0xe0] sm:$0xff]
          %v1070 = vld [vmem:[%s247 + $0xe8] sm:$0xff]
          %v1071 = vld [vmem:[%s247 + $0xf0] sm:$0xff]
          %v1072 = vld [vmem:[%s247 + $0xf8] sm:$0xff]
          %v1073 = vld [vmem:[%s247 + $0x100] sm:$0xff]
          %v1074 = vld [vmem:[%s247 + $0x108] sm:$0xff]
          %v1075 = vld [vmem:[%s247 + $0x110] sm:$0xff]
          %v1076 = vld [vmem:[%s247 + $0x118] sm:$0xff]
          %v1077 = vld [vmem:[%s247 + $0x120] sm:$0xff]
          %v1078 = vld [vmem:[%s247 + $0x128] sm:$0xff]
          %v1079 = vld [vmem:[%s247 + $0x130] sm:$0xff]
          %v1080 = vld [vmem:[%s247 + $0x138] sm:$0xff]
          %v1081 = vld [vmem:[%s247 + $0x140] sm:$0xff]
          %v1082 = vld [vmem:[%s247 + $0x148] sm:$0xff]
          %v1083 = vld [vmem:[%s247 + $0x150] sm:$0xff]
          %v1084 = vld [vmem:[%s247 + $0x158] sm:$0xff]
          %v1085 = vld [vmem:[%s247 + $0x160] sm:$0xff]
          %v1086 = vld [vmem:[%s247 + $0x168] sm:$0xff]
          %v1087 = vld [vmem:[%s247 + $0x170] sm:$0xff]
          %v1088 = vld [vmem:[%s247 + $0x178] sm:$0xff]
          %v1089 = vld [vmem:[%s247 + $0x180] sm:$0xff]
          %v1090 = vld [vmem:[%s247 + $0x188] sm:$0xff]
          %v1091 = vld [vmem:[%s247 + $0x190] sm:$0xff]
          %v1092 = vld [vmem:[%s247 + $0x198] sm:$0xff]
          %v1093 = vld [vmem:[%s247 + $0x1a0] sm:$0xff]
          %v1094 = vld [vmem:[%s247 + $0x1a8] sm:$0xff]
          %v1095 = vld [vmem:[%s247 + $0x1b0] sm:$0xff]
          %v1096 = vld [vmem:[%s247 + $0x1b8] sm:$0xff]
          %v1097 = vld [vmem:[%s247 + $0x1c0] sm:$0xff]
          %v1098 = vld [vmem:[%s247 + $0x1c8] sm:$0xff]
          %v1099 = vld [vmem:[%s247 + $0x1d0] sm:$0xff]
          %v1100 = vld [vmem:[%s247 + $0x1d8] sm:$0xff]
          %v1101 = vld [vmem:[%s247 + $0x1e0] sm:$0xff]
          %v1102 = vld [vmem:[%s247 + $0x1e8] sm:$0xff]
          %v1103 = vld [vmem:[%s247 + $0x1f0] sm:$0xff]
          %v1104 = vld [vmem:[%s247 + $0x1f8] sm:$0xff]
          %vm1105 = vmpackc.low %vm977, %vm977
          %vm1106 = vmpackc.low %vm978, %vm978
          %vm1107 = vmpackc.low %vm979, %vm979
          %vm1108 = vmpackc.low %vm980, %vm980
          %vm1109 = vmpackc.low %vm981, %vm981
          %vm1110 = vmpackc.low %vm982, %vm982
          %vm1111 = vmpackc.low %vm983, %vm983
          %vm1112 = vmpackc.low %vm984, %vm984
          %vm1113 = vmpackc.low %vm985, %vm985
          %vm1114 = vmpackc.low %vm986, %vm986
          %vm1115 = vmpackc.low %vm987, %vm987
          %vm1116 = vmpackc.low %vm988, %vm988
          %vm1117 = vmpackc.low %vm989, %vm989
          %vm1118 = vmpackc.low %vm990, %vm990
          %vm1119 = vmpackc.low %vm991, %vm991
          %vm1120 = vmpackc.low %vm992, %vm992
          %vm1121 = vmpackc.low %vm993, %vm993
          %vm1122 = vmpackc.low %vm994, %vm994
          %vm1123 = vmpackc.low %vm995, %vm995
          %vm1124 = vmpackc.low %vm996, %vm996
          %vm1125 = vmpackc.low %vm997, %vm997
          %vm1126 = vmpackc.low %vm998, %vm998
          %vm1127 = vmpackc.low %vm999, %vm999
          %vm1128 = vmpackc.low %vm1000, %vm1000
          %vm1129 = vmpackc.low %vm1001, %vm1001
          %vm1130 = vmpackc.low %vm1002, %vm1002
          %vm1131 = vmpackc.low %vm1003, %vm1003
          %vm1132 = vmpackc.low %vm1004, %vm1004
          %vm1133 = vmpackc.low %vm1005, %vm1005
          %vm1134 = vmpackc.low %vm1006, %vm1006
          %vm1135 = vmpackc.low %vm1007, %vm1007
          %vm1136 = vmpackc.low %vm1008, %vm1008
          %vm1137 = vmpackc.low %vm1009, %vm1009
          %vm1138 = vmpackc.low %vm1010, %vm1010
          %vm1139 = vmpackc.low %vm1011, %vm1011
          %vm1140 = vmpackc.low %vm1012, %vm1012
          %vm1141 = vmpackc.low %vm1013, %vm1013
          %vm1142 = vmpackc.low %vm1014, %vm1014
          %vm1143 = vmpackc.low %vm1015, %vm1015
          %vm1144 = vmpackc.low %vm1016, %vm1016
          %vm1145 = vmpackc.low %vm1017, %vm1017
          %vm1146 = vmpackc.low %vm1018, %vm1018
          %vm1147 = vmpackc.low %vm1019, %vm1019
          %vm1148 = vmpackc.low %vm1020, %vm1020
          %vm1149 = vmpackc.low %vm1021, %vm1021
          %vm1150 = vmpackc.low %vm1022, %vm1022
          %vm1151 = vmpackc.low %vm1023, %vm1023
          %vm1152 = vmpackc.low %vm1024, %vm1024
          %vm1153 = vmpackc.low %vm1025, %vm1025
          %vm1154 = vmpackc.low %vm1026, %vm1026
          %vm1155 = vmpackc.low %vm1027, %vm1027
          %vm1156 = vmpackc.low %vm1028, %vm1028
          %vm1157 = vmpackc.low %vm1029, %vm1029
          %vm1158 = vmpackc.low %vm1030, %vm1030
          %vm1159 = vmpackc.low %vm1031, %vm1031
          %vm1160 = vmpackc.low %vm1032, %vm1032
          %vm1161 = vmpackc.low %vm1033, %vm1033
          %vm1162 = vmpackc.low %vm1034, %vm1034
          %vm1163 = vmpackc.low %vm1035, %vm1035
          %vm1164 = vmpackc.low %vm1036, %vm1036
          %vm1165 = vmpackc.low %vm1037, %vm1037
          %vm1166 = vmpackc.low %vm1038, %vm1038
          %vm1167 = vmpackc.low %vm1039, %vm1039
          %vm1168 = vmpackc.low %vm1040, %vm1040
          %v1169 = vsel %vm1105, %v1041, 0
          %v1170 = vsel %vm1106, %v1042, 0
          %v1171 = vsel %vm1107, %v1043, 0
          %v1172 = vsel %vm1108, %v1044, 0
          %v1173 = vsel %vm1109, %v1045, 0
          %v1174 = vsel %vm1110, %v1046, 0
          %v1175 = vsel %vm1111, %v1047, 0
          %v1176 = vsel %vm1112, %v1048, 0
          %v1177 = vsel %vm1113, %v1049, 0
          %v1178 = vsel %vm1114, %v1050, 0
          %v1179 = vsel %vm1115, %v1051, 0
          %v1180 = vsel %vm1116, %v1052, 0
          %v1181 = vsel %vm1117, %v1053, 0
          %v1182 = vsel %vm1118, %v1054, 0
          %v1183 = vsel %vm1119, %v1055, 0
          %v1184 = vsel %vm1120, %v1056, 0
          %v1185 = vsel %vm1121, %v1057, 0
          %v1186 = vsel %vm1122, %v1058, 0
          %v1187 = vsel %vm1123, %v1059, 0
          %v1188 = vsel %vm1124, %v1060, 0
          %v1189 = vsel %vm1125, %v1061, 0
          %v1190 = vsel %vm1126, %v1062, 0
          %v1191 = vsel %vm1127, %v1063, 0
          %v1192 = vsel %vm1128, %v1064, 0
          %v1193 = vsel %vm1129, %v1065, 0
          %v1194 = vsel %vm1130, %v1066, 0
          %v1195 = vsel %vm1131, %v1067, 0
          %v1196 = vsel %vm1132, %v1068, 0
          %v1197 = vsel %vm1133, %v1069, 0
          %v1198 = vsel %vm1134, %v1070, 0
          %v1199 = vsel %vm1135, %v1071, 0
          %v1200 = vsel %vm1136, %v1072, 0
          %v1201 = vsel %vm1137, %v1073, 0
          %v1202 = vsel %vm1138, %v1074, 0
          %v1203 = vsel %vm1139, %v1075, 0
          %v1204 = vsel %vm1140, %v1076, 0
          %v1205 = vsel %vm1141, %v1077, 0
          %v1206 = vsel %vm1142, %v1078, 0
          %v1207 = vsel %vm1143, %v1079, 0
          %v1208 = vsel %vm1144, %v1080, 0
          %v1209 = vsel %vm1145, %v1081, 0
          %v1210 = vsel %vm1146, %v1082, 0
          %v1211 = vsel %vm1147, %v1083, 0
          %v1212 = vsel %vm1148, %v1084, 0
          %v1213 = vsel %vm1149, %v1085, 0
          %v1214 = vsel %vm1150, %v1086, 0
          %v1215 = vsel %vm1151, %v1087, 0
          %v1216 = vsel %vm1152, %v1088, 0
          %v1217 = vsel %vm1153, %v1089, 0
          %v1218 = vsel %vm1154, %v1090, 0
          %v1219 = vsel %vm1155, %v1091, 0
          %v1220 = vsel %vm1156, %v1092, 0
          %v1221 = vsel %vm1157, %v1093, 0
          %v1222 = vsel %vm1158, %v1094, 0
          %v1223 = vsel %vm1159, %v1095, 0
          %v1224 = vsel %vm1160, %v1096, 0
          %v1225 = vsel %vm1161, %v1097, 0
          %v1226 = vsel %vm1162, %v1098, 0
          %v1227 = vsel %vm1163, %v1099, 0
          %v1228 = vsel %vm1164, %v1100, 0
          %v1229 = vsel %vm1165, %v1101, 0
          %v1230 = vsel %vm1166, %v1102, 0
          %v1231 = vsel %vm1167, %v1103, 0
          %v1232 = vsel %vm1168, %v1104, 0
          %v1233 = vld [vmem:[#allocation2] sm:$0xff]
          %v1234 = vld [vmem:[#allocation2 + $0x8] sm:$0xff]
          %v1299 = vunpack.c.l.b16 %v1169
          %v1300 = vunpack.c.h.b16 %v1169
          %v1301 = vunpack.c.l.b16 %v1170
          %v1302 = vunpack.c.h.b16 %v1170
          %v1303 = vunpack.c.l.b16 %v1171
          %v1304 = vunpack.c.h.b16 %v1171
          %v1305 = vunpack.c.l.b16 %v1172
          %v1306 = vunpack.c.h.b16 %v1172
          %v1307 = vunpack.c.l.b16 %v1173
          %v1308 = vunpack.c.h.b16 %v1173
          %v1309 = vunpack.c.l.b16 %v1174
          %v1310 = vunpack.c.h.b16 %v1174
          %v1311 = vunpack.c.l.b16 %v1175
          %v1312 = vunpack.c.h.b16 %v1175
          %v1313 = vunpack.c.l.b16 %v1176
          %v1314 = vunpack.c.h.b16 %v1176
          %v1315 = vunpack.c.l.b16 %v1177
          %v1316 = vunpack.c.h.b16 %v1177
          %v1317 = vunpack.c.l.b16 %v1178
          %v1318 = vunpack.c.h.b16 %v1178
          %v1319 = vunpack.c.l.b16 %v1179
          %v1320 = vunpack.c.h.b16 %v1179
          %v1321 = vunpack.c.l.b16 %v1180
          %v1322 = vunpack.c.h.b16 %v1180
          %v1323 = vunpack.c.l.b16 %v1181
          %v1324 = vunpack.c.h.b16 %v1181
          %v1325 = vunpack.c.l.b16 %v1182
          %v1326 = vunpack.c.h.b16 %v1182
          %v1327 = vunpack.c.l.b16 %v1183
          %v1328 = vunpack.c.h.b16 %v1183
          %v1329 = vunpack.c.l.b16 %v1184
          %v1330 = vunpack.c.h.b16 %v1184
          %v1331 = vunpack.c.l.b16 %v1185
          %v1332 = vunpack.c.h.b16 %v1185
          %v1333 = vunpack.c.l.b16 %v1186
          %v1334 = vunpack.c.h.b16 %v1186
          %v1335 = vunpack.c.l.b16 %v1187
          %v1336 = vunpack.c.h.b16 %v1187
          %v1337 = vunpack.c.l.b16 %v1188
          %v1338 = vunpack.c.h.b16 %v1188
          %v1339 = vunpack.c.l.b16 %v1189
          %v1340 = vunpack.c.h.b16 %v1189
          %v1341 = vunpack.c.l.b16 %v1190
          %v1342 = vunpack.c.h.b16 %v1190
          %v1343 = vunpack.c.l.b16 %v1191
          %v1344 = vunpack.c.h.b16 %v1191
          %v1345 = vunpack.c.l.b16 %v1192
          %v1346 = vunpack.c.h.b16 %v1192
          %v1347 = vunpack.c.l.b16 %v1193
          %v1348 = vunpack.c.h.b16 %v1193
          %v1349 = vunpack.c.l.b16 %v1194
          %v1350 = vunpack.c.h.b16 %v1194
          %v1351 = vunpack.c.l.b16 %v1195
          %v1352 = vunpack.c.h.b16 %v1195
          %v1353 = vunpack.c.l.b16 %v1196
          %v1354 = vunpack.c.h.b16 %v1196
          %v1355 = vunpack.c.l.b16 %v1197
          %v1356 = vunpack.c.h.b16 %v1197
          %v1357 = vunpack.c.l.b16 %v1198
          %v1358 = vunpack.c.h.b16 %v1198
          %v1359 = vunpack.c.l.b16 %v1199
          %v1360 = vunpack.c.h.b16 %v1199
          %v1361 = vunpack.c.l.b16 %v1200
          %v1362 = vunpack.c.h.b16 %v1200
          %v1363 = vunpack.c.l.b16 %v1201
          %v1364 = vunpack.c.h.b16 %v1201
          %v1365 = vunpack.c.l.b16 %v1202
          %v1366 = vunpack.c.h.b16 %v1202
          %v1367 = vunpack.c.l.b16 %v1203
          %v1368 = vunpack.c.h.b16 %v1203
          %v1369 = vunpack.c.l.b16 %v1204
          %v1370 = vunpack.c.h.b16 %v1204
          %v1371 = vunpack.c.l.b16 %v1205
          %v1372 = vunpack.c.h.b16 %v1205
          %v1373 = vunpack.c.l.b16 %v1206
          %v1374 = vunpack.c.h.b16 %v1206
          %v1375 = vunpack.c.l.b16 %v1207
          %v1376 = vunpack.c.h.b16 %v1207
          %v1377 = vunpack.c.l.b16 %v1208
          %v1378 = vunpack.c.h.b16 %v1208
          %v1379 = vunpack.c.l.b16 %v1209
          %v1380 = vunpack.c.h.b16 %v1209
          %v1381 = vunpack.c.l.b16 %v1210
          %v1382 = vunpack.c.h.b16 %v1210
          %v1383 = vunpack.c.l.b16 %v1211
          %v1384 = vunpack.c.h.b16 %v1211
          %v1385 = vunpack.c.l.b16 %v1212
          %v1386 = vunpack.c.h.b16 %v1212
          %v1387 = vunpack.c.l.b16 %v1213
          %v1388 = vunpack.c.h.b16 %v1213
          %v1389 = vunpack.c.l.b16 %v1214
          %v1390 = vunpack.c.h.b16 %v1214
          %v1391 = vunpack.c.l.b16 %v1215
          %v1392 = vunpack.c.h.b16 %v1215
          %v1393 = vunpack.c.l.b16 %v1216
          %v1394 = vunpack.c.h.b16 %v1216
          %v1395 = vunpack.c.l.b16 %v1217
          %v1396 = vunpack.c.h.b16 %v1217
          %v1397 = vunpack.c.l.b16 %v1218
          %v1398 = vunpack.c.h.b16 %v1218
          %v1399 = vunpack.c.l.b16 %v1219
          %v1400 = vunpack.c.h.b16 %v1219
          %v1401 = vunpack.c.l.b16 %v1220
          %v1402 = vunpack.c.h.b16 %v1220
          %v1403 = vunpack.c.l.b16 %v1221
          %v1404 = vunpack.c.h.b16 %v1221
          %v1405 = vunpack.c.l.b16 %v1222
          %v1406 = vunpack.c.h.b16 %v1222
          %v1407 = vunpack.c.l.b16 %v1223
          %v1408 = vunpack.c.h.b16 %v1223
          %v1409 = vunpack.c.l.b16 %v1224
          %v1410 = vunpack.c.h.b16 %v1224
          %v1411 = vunpack.c.l.b16 %v1225
          %v1412 = vunpack.c.h.b16 %v1225
          %v1413 = vunpack.c.l.b16 %v1226
          %v1414 = vunpack.c.h.b16 %v1226
          %v1415 = vunpack.c.l.b16 %v1227
          %v1416 = vunpack.c.h.b16 %v1227
          %v1417 = vunpack.c.l.b16 %v1228
          %v1418 = vunpack.c.h.b16 %v1228
          %v1419 = vunpack.c.l.b16 %v1229
          %v1420 = vunpack.c.h.b16 %v1229
          %v1421 = vunpack.c.l.b16 %v1230
          %v1422 = vunpack.c.h.b16 %v1230
          %v1423 = vunpack.c.l.b16 %v1231
          %v1424 = vunpack.c.h.b16 %v1231
          %v1425 = vunpack.c.l.b16 %v1232
          %v1426 = vunpack.c.h.b16 %v1232
          %v1427 = vpack.c.b16 %v1301, %v1299
          %v1428 = vpack.c.b16 %v1302, %v1300
          %v1429 = vpack.c.b16 %v1305, %v1303
          %v1430 = vpack.c.b16 %v1306, %v1304
          %v1431 = vpack.c.b16 %v1309, %v1307
          %v1432 = vpack.c.b16 %v1310, %v1308
          %v1433 = vpack.c.b16 %v1313, %v1311
          %v1434 = vpack.c.b16 %v1314, %v1312
          %v1435 = vpack.c.b16 %v1317, %v1315
          %v1436 = vpack.c.b16 %v1318, %v1316
          %v1437 = vpack.c.b16 %v1321, %v1319
          %v1438 = vpack.c.b16 %v1322, %v1320
          %v1439 = vpack.c.b16 %v1325, %v1323
          %v1440 = vpack.c.b16 %v1326, %v1324
          %v1441 = vpack.c.b16 %v1329, %v1327
          %v1442 = vpack.c.b16 %v1330, %v1328
          %v1443 = vpack.c.b16 %v1333, %v1331
          %v1444 = vpack.c.b16 %v1334, %v1332
          %v1445 = vpack.c.b16 %v1337, %v1335
          %v1446 = vpack.c.b16 %v1338, %v1336
          %v1447 = vpack.c.b16 %v1341, %v1339
          %v1448 = vpack.c.b16 %v1342, %v1340
          %v1449 = vpack.c.b16 %v1345, %v1343
          %v1450 = vpack.c.b16 %v1346, %v1344
          %v1451 = vpack.c.b16 %v1349, %v1347
          %v1452 = vpack.c.b16 %v1350, %v1348
          %v1453 = vpack.c.b16 %v1353, %v1351
          %v1454 = vpack.c.b16 %v1354, %v1352
          %v1455 = vpack.c.b16 %v1357, %v1355
          %v1456 = vpack.c.b16 %v1358, %v1356
          %v1457 = vpack.c.b16 %v1361, %v1359
          %v1458 = vpack.c.b16 %v1362, %v1360
          %v1459 = vpack.c.b16 %v1365, %v1363
          %v1460 = vpack.c.b16 %v1366, %v1364
          %v1461 = vpack.c.b16 %v1369, %v1367
          %v1462 = vpack.c.b16 %v1370, %v1368
          %v1463 = vpack.c.b16 %v1373, %v1371
          %v1464 = vpack.c.b16 %v1374, %v1372
          %v1465 = vpack.c.b16 %v1377, %v1375
          %v1466 = vpack.c.b16 %v1378, %v1376
          %v1467 = vpack.c.b16 %v1381, %v1379
          %v1468 = vpack.c.b16 %v1382, %v1380
          %v1469 = vpack.c.b16 %v1385, %v1383
          %v1470 = vpack.c.b16 %v1386, %v1384
          %v1471 = vpack.c.b16 %v1389, %v1387
          %v1472 = vpack.c.b16 %v1390, %v1388
          %v1473 = vpack.c.b16 %v1393, %v1391
          %v1474 = vpack.c.b16 %v1394, %v1392
          %v1475 = vpack.c.b16 %v1397, %v1395
          %v1476 = vpack.c.b16 %v1398, %v1396
          %v1477 = vpack.c.b16 %v1401, %v1399
          %v1478 = vpack.c.b16 %v1402, %v1400
          %v1479 = vpack.c.b16 %v1405, %v1403
          %v1480 = vpack.c.b16 %v1406, %v1404
          %v1481 = vpack.c.b16 %v1409, %v1407
          %v1482 = vpack.c.b16 %v1410, %v1408
          %v1483 = vpack.c.b16 %v1413, %v1411
          %v1484 = vpack.c.b16 %v1414, %v1412
          %v1485 = vpack.c.b16 %v1417, %v1415
          %v1486 = vpack.c.b16 %v1418, %v1416
          %v1487 = vpack.c.b16 %v1421, %v1419
          %v1488 = vpack.c.b16 %v1422, %v1420
          %v1489 = vpack.c.b16 %v1425, %v1423
          %v1490 = vpack.c.b16 %v1426, %v1424
          %1555 = vmatprep.subr.bf16.mxu0 %v1428
          %1556 = vmatpush1.bf16.msra.mxu0 %v1427
          %1557 = vmatprep.subr.bf16.mxu0 %v1430
          %1558 = vmatpush1.bf16.msra.mxu0 %v1429
          %1559 = vmatprep.subr.bf16.mxu0 %v1432
          %1560 = vmatpush1.bf16.msra.mxu0 %v1431
          %1561 = vmatprep.subr.bf16.mxu0 %v1434
          %1562 = vmatpush1.bf16.msra.mxu0 %v1433
          %1563 = vmatprep.subr.bf16.mxu0 %v1436
          %1564 = vmatpush1.bf16.msra.mxu0 %v1435
          %1565 = vmatprep.subr.bf16.mxu0 %v1438
          %1566 = vmatpush1.bf16.msra.mxu0 %v1437
          %1567 = vmatprep.subr.bf16.mxu0 %v1440
          %1568 = vmatpush1.bf16.msra.mxu0 %v1439
          %1569 = vmatprep.subr.bf16.mxu0 %v1442
          %1570 = vmatpush1.bf16.msra.mxu0 %v1441
          %1571 = vmatprep.subr.bf16.mxu0 %v1444
          %1572 = vmatpush1.bf16.msra.mxu0 %v1443
          %1573 = vmatprep.subr.bf16.mxu0 %v1446
          %1574 = vmatpush1.bf16.msra.mxu0 %v1445
          %1575 = vmatprep.subr.bf16.mxu0 %v1448
          %1576 = vmatpush1.bf16.msra.mxu0 %v1447
          %1577 = vmatprep.subr.bf16.mxu0 %v1450
          %1578 = vmatpush1.bf16.msra.mxu0 %v1449
          %1579 = vmatprep.subr.bf16.mxu0 %v1452
          %1580 = vmatpush1.bf16.msra.mxu0 %v1451
          %1581 = vmatprep.subr.bf16.mxu0 %v1454
          %1582 = vmatpush1.bf16.msra.mxu0 %v1453
          %1583 = vmatprep.subr.bf16.mxu0 %v1456
          %1584 = vmatpush1.bf16.msra.mxu0 %v1455
          %1585 = vmatprep.subr.bf16.mxu0 %v1458
          %1586 = vmatpush1.bf16.msra.mxu0 %v1457
          %1587 = vmatprep.mubr.bf16.mxu0 %v845
          %1588 = vmatmul.mubr.bf16.gmra.mrb[0].mxu0 %v844
          %v1589 = vpop.f32.mrb[0].mxu0
          %v1590 = vadd.f32 0.0, %v1589
          %v1591 = vpop.f32.mrb[0].mxu0
          %v1592 = vadd.f32 0.0, %v1591
          %v1593 = vpop.f32.mrb[0].mxu0
          %v1594 = vpop.f32.mrb[0].mxu0
          %1595 = vdwg.mxu0
          %1596 = vmatprep.subr.bf16.mxu0 %v1460
          %1597 = vmatpush1.bf16.msra.mxu0 %v1459
          %1598 = vmatprep.subr.bf16.mxu0 %v1462
          %1599 = vmatpush1.bf16.msra.mxu0 %v1461
          %1600 = vmatprep.subr.bf16.mxu0 %v1464
          %1601 = vmatpush1.bf16.msra.mxu0 %v1463
          %1602 = vmatprep.subr.bf16.mxu0 %v1466
          %1603 = vmatpush1.bf16.msra.mxu0 %v1465
          %1604 = vmatprep.subr.bf16.mxu0 %v1468
          %1605 = vmatpush1.bf16.msra.mxu0 %v1467
          %1606 = vmatprep.subr.bf16.mxu0 %v1470
          %1607 = vmatpush1.bf16.msra.mxu0 %v1469
          %1608 = vmatprep.subr.bf16.mxu0 %v1472
          %1609 = vmatpush1.bf16.msra.mxu0 %v1471
          %1610 = vmatprep.subr.bf16.mxu0 %v1474
          %1611 = vmatpush1.bf16.msra.mxu0 %v1473
          %1612 = vmatprep.subr.bf16.mxu0 %v1476
          %1613 = vmatpush1.bf16.msra.mxu0 %v1475
          %1614 = vmatprep.subr.bf16.mxu0 %v1478
          %1615 = vmatpush1.bf16.msra.mxu0 %v1477
          %1616 = vmatprep.subr.bf16.mxu0 %v1480
          %1617 = vmatpush1.bf16.msra.mxu0 %v1479
          %1618 = vmatprep.subr.bf16.mxu0 %v1482
          %1619 = vmatpush1.bf16.msra.mxu0 %v1481
          %1620 = vmatprep.subr.bf16.mxu0 %v1484
          %1621 = vmatpush1.bf16.msra.mxu0 %v1483
          %1622 = vmatprep.subr.bf16.mxu0 %v1486
          %1623 = vmatpush1.bf16.msra.mxu0 %v1485
          %1624 = vmatprep.subr.bf16.mxu0 %v1488
          %1625 = vmatpush1.bf16.msra.mxu0 %v1487
          %1626 = vmatprep.subr.bf16.mxu0 %v1490
          %1627 = vmatpush1.bf16.msra.mxu0 %v1489
          %1628 = vmatprep.mubr.bf16.mxu0 %v847
          %1629 = vmatmul.mubr.bf16.gmra.mrb[0].mxu0 %v846
          %v1630 = vpop.f32.mrb[0].mxu0
          %v1631 = vadd.f32 %v1590, %v1630
          %v1632 = vpop.f32.mrb[0].mxu0
          %v1633 = vadd.f32 %v1592, %v1632
          %v1634 = vpop.f32.mrb[0].mxu0
          %v1635 = vpop.f32.mrb[0].mxu0
          %1636 = vdwg.mxu0
          %v1637 = vadd.f32 %v1233, %v1631
          %v1638 = vadd.f32 %v1234, %v1633
          %v1639 = vld [vmem:[%s256] sm:$0x3]
          %v1641 = vlaneseq
          %v1642 = vshrl.u32 %v1641, 7
          %v1643 = vsub.s32 0, %v1642
          %v1644 = vrot.slane %v1639, %v1643
          %v1645 = vlaneseq
          %v1646 = vshrl.u32 %v1645, 7
          %v1647 = vsub.s32 1, %v1646
          %v1648 = vrot.slane %v1639, %v1647
          %v1651 = vadd.f32 %v1637, %v1644
          %v1652 = vadd.f32 %v1638, %v1648
          %v1653 = vmax.f32 %v1651, 0.0
          %v1654 = vmax.f32 %v1652, 0.0
          %1655 = vst [vmem:[%s306] sm:$0xff] %v1653
          %1656 = vst [vmem:[%s306 + $0x8] sm:$0xff] %v1654
        $region56: #{cvae_prior_forward.1} parent=31 // pred_fallthru
          _
        %s1657 = smul.u32 2, %s24
        %p1658 = scmp.lt.s32.totalorder %s1657, 3
        %s1659 = scalar_select %p1658, %s1657, 3
        %s1660 = smul.addr %s1659, 8
        %s1661 = scalar_lea.vmem %s3, %s1660
        // Predicated region
        $region57: #{cvae_prior_forward.1} parent=31 // pred_check
          %p1662 = pneg %p130
        $region58: #{cvae_prior_forward.1} parent=31 // pred_check_branch
          %1664 = sbr.rel (%p1662) target = $region60
        $region59: #{cvae_prior_forward.1} parent=31 // pred_region
          %s1665 = smul.u32 2, %s24
        $region60: #{cvae_prior_forward.1} parent=31 // pred_fallthru
          _
      $region32: #{cvae_prior_forward.1} parent=5 // pred_fallthru
        _
      %p1666 = scmp.le.s32.totalorder 2, %s15
      // Predicated region
      $region61: #{cvae_prior_forward.1} parent=5 // pred_check
        %p1667 = pneg %p1666
      $region62: #{cvae_prior_forward.1} parent=5 // pred_check_branch
        %1669 = sbr.rel (%p1667) target = $region64
      $region63: #{cvae_prior_forward.1} parent=5 // pred_region
        %s1670 = ssub.s32 %s15, 2
        // Predicated region
        $region65: #{cvae_prior_forward.1} parent=63 // pred_check
          %p1671 = pneg %p136
        $region66: #{cvae_prior_forward.1} parent=63 // pred_check_branch
          %1673 = sbr.rel (%p1671) target = $region68
        $region67: #{cvae_prior_forward.1} parent=63 // pred_region
          %s1674 = smul.u32 2, %s26
          %p1675 = scmp.lt.s32.totalorder %s1674, 3
          %s1676 = scalar_select %p1675, %s1674, 3
          %s1677 = smul.addr %s1676, 8
          %s1678 = scalar_lea.vmem %s3, %s1677
        $region68: #{cvae_prior_forward.1} parent=63 // pred_fallthru
          _
      $region64: #{cvae_prior_forward.1} parent=5 // pred_fallthru
        _
    $region6: #{cvae_prior_forward.1} parent=1 // loop_footer
      %s19 = sadd.s32 1, %s15
    $region7: #{cvae_prior_forward.1} parent=1 // loop_footer_branch
      %14 = sbr.rel target = $region3
    $region8: #{cvae_prior_forward.1} parent=1 // loop_exit
      _
    %1679 = vsyncpa [#allocation4], 1
    %s1680 = scalar_lea.sflag [#allocation4], 1
    %1681 = vsyncpa %s1680, 1
    %1682 = vsyncpa [#allocation6], 1
    %s1683 = scalar_lea.sflag [#allocation6], 1
    %1684 = vsyncpa %s1683, 1

</llo_original>
